<compile_context>
chip_gen: v7x
topology: tpu7x:2x2x1
jax: 0.10.0
libtpu: 0.0.40
codegen_flags: <defaults>
</compile_context>

<pallas_src>
import functools

import jax
import jax.numpy as jnp
from jax import lax
from jax.experimental import pallas as pl
from jax.experimental.pallas import tpu as pltpu

EPS = 1e-5


def _tcn_kernel(prelu_ref, x_ref, bias1_ref, w1x_ref, vecs_ref, w3g2_ref,
                obias_ref, o_ref, *, T, K, dilation, pad, conv_channels,
                batch_block):
    Cc = conv_channels
    inv_n = 1.0 / float(Cc * T)

    vecs = vecs_ref[...]                    # (Cc, K + 3) packed per-channel params
    wd = vecs[:, :K]                        # depthwise taps
    bd = vecs[:, K:K + 1]                   # depthwise bias
    g1 = vecs[:, K + 1:K + 2]               # gLN1 gamma
    be1 = vecs[:, K + 2:K + 3]              # gLN1 beta

    obias = obias_ref[...]                  # (Cin, 2): [b3' = w3@be2+b3, rowsum(W3g2)]
    b3f = obias[:, 0:1]
    rsum = obias[:, 1:2]

    a1 = prelu_ref[0]                       # PReLU slopes (SMEM scalars)
    a2 = prelu_ref[1]

    # Hoisted constants shared across the batch block.
    ones_row = jnp.ones((1, Cc), jnp.float32)              # MXU reduction vector
    t_idx = lax.broadcasted_iota(jnp.int32, (1, T), 1)     # (1, T) lane index

    for bi in range(batch_block):           # static loop: Bb batches per grid step
        # --- 1x1 conv on x channels only (speaker term + bias folded into bias1)
        h = jnp.dot(w1x_ref[...], x_ref[bi].astype(w1x_ref.dtype),
                    preferred_element_type=jnp.float32) + bias1_ref[bi]

        # --- PReLU ------------------------------------------------------------
        h = jnp.where(h > 0, h, a1 * h)

        # --- gLN1: stats on the MXU (ones-row matmul) + fused scale/shift ------
        s1 = jnp.sum(jnp.dot(ones_row, h, preferred_element_type=jnp.float32))
        s2 = jnp.sum(jnp.dot(ones_row, h * h, preferred_element_type=jnp.float32))
        mean = s1 * inv_n
        var = jnp.maximum(s2 * inv_n - mean * mean, 0.0)
        scale1 = g1 * lax.rsqrt(var + EPS)                  # (Cc, 1)
        shift1 = be1 - mean * scale1                        # (Cc, 1)
        h = h * scale1 + shift1

        # --- depthwise dilated conv ('same'): XLU rolls + single-compare masks -
        acc = jnp.zeros((Cc, T), jnp.float32)
        for k in range(K):
            s = k * dilation - pad                          # static source offset
            if s == 0:
                contrib = h
            else:
                rolled = pltpu.roll(h, shift=(-s) % T, axis=1)  # rolled[:, t] = h[:, t+s mod T]
                if s < 0:
                    mask = t_idx >= -s
                else:
                    mask = t_idx < T - s
                contrib = jnp.where(mask, rolled, 0.0)
            acc = acc + wd[:, k:k + 1] * contrib
        acc = acc + bd

        # --- PReLU ------------------------------------------------------------
        h2 = jnp.where(acc > 0, acc, a2 * acc)

        # --- gLN2 stats (MXU); the affine is folded into the output conv -------
        s1b = jnp.sum(jnp.dot(ones_row, h2, preferred_element_type=jnp.float32))
        s2b = jnp.sum(jnp.dot(ones_row, h2 * h2, preferred_element_type=jnp.float32))
        mean2 = s1b * inv_n
        var2 = jnp.maximum(s2b * inv_n - mean2 * mean2, 0.0)
        r2 = lax.rsqrt(var2 + EPS)

        # --- 1x1 output conv with gLN2 folded in + residual add ----------------
        out = r2 * jnp.dot(w3g2_ref[...], h2.astype(w3g2_ref.dtype),
                           preferred_element_type=jnp.float32)
        out = out + (b3f - (r2 * mean2) * rsum)
        o_ref[bi] = x_ref[bi] + out


def tcn_forward(x, ref, params, *, kernel_size, dilation,
                matmul_dtype=jnp.float32, batch_block=1):
    """x: (B, Cin, T) float32, ref: (B, spk) float32.

    matmul_dtype: use jnp.bfloat16 on v6e/v7x for native MXU rate (f32 accum);
    default f32 preserves exact parity with the PyTorch module.
    """
    B, Cin, T = x.shape
    K = kernel_size
    Cc = params["w1"].shape[0]
    pad = dilation * (kernel_size - 1) // 2
    # 'same' output length only holds when dilation*(K-1) is even (matches
    # PyTorch symmetric padding); roll-based taps also require pad < T.
    assert (dilation * (kernel_size - 1)) % 2 == 0, \
        "dilation*(kernel_size-1) must be even for 'same'-length output"
    assert pad < T, "roll-based depthwise conv assumes pad < T (no full wrap)"
    assert B % batch_block == 0, "batch_block must divide B"
    Bb = batch_block

    w1 = params["w1"]                                   # (Cc, Cin + spk)
    w1x = w1[:, :Cin].astype(matmul_dtype)              # (Cc, Cin)
    # Speaker contribution through the 1x1 conv is time-invariant: fold it and
    # the conv bias into one per-batch (Cc, 1) bias -> no y0 concat in HBM.
    bias1 = (ref @ w1[:, Cin:].T + params["b1"][:, 0][None, :])[:, :, None]

    # Per-channel vectors still needed in-kernel, packed into one VMEM block.
    vecs = jnp.concatenate([params["wd"], params["bd"], params["g1"],
                            params["be1"]], axis=1)     # (Cc, K + 3)
    prelu = jnp.concatenate([params["a1"].reshape(-1),
                             params["a2"].reshape(-1)])  # (2,) -> SMEM

    # gLN2 affine folded into the output 1x1 conv (f32 precompute in wrapper).
    w3 = params["w3"]                                    # (Cin, Cc)
    w3g2_f32 = w3 * params["g2"][:, 0][None, :]          # (Cin, Cc)
    b3f = w3 @ params["be2"] + params["b3"]              # (Cin, 1)
    rsum = jnp.sum(w3g2_f32, axis=1, keepdims=True)      # (Cin, 1)
    obias = jnp.concatenate([b3f, rsum], axis=1)         # (Cin, 2)
    w3g2 = w3g2_f32.astype(matmul_dtype)

    kernel = functools.partial(_tcn_kernel, T=T, K=K, dilation=dilation,
                               pad=pad, conv_channels=Cc, batch_block=Bb)
    full = lambda shape: pl.BlockSpec(shape, lambda b: (0,) * len(shape))

    # Advisory cost for the XLA scheduler around the custom call.
    flops = B * T * (4 * Cc * Cin + 2 * Cc * K + 24 * Cc + 4 * Cin)
    bytes_accessed = 4 * (2 * B * Cin * T + B * Cc
                          + Cc * (Cin + K + 3) + Cin * (Cc + 2) + 2)

    # VMEM budget: double-buffered x/out tiles + live (Cc,T)/(Cin,T) working
    # slabs + params; 1.5x headroom (no double-hedging) with a generation-aware
    # cap and a small floor for compiler-internal scratch at tiny shapes.
    est = 4 * (Bb * (4 * Cin * T + 3 * Cc * T + Cin * T + Cc)
               + Cc * (Cin + K + 3) + Cin * (Cc + 2))
    try:
        cap = min(int(0.85 * pltpu.get_tpu_info().vmem_capacity_bytes),
                  100 * 2 ** 20)
    except Exception:
        cap = 56 * 2 ** 20        # safe on every generation incl. v7x (64 MiB)
    vmem_limit = int(min(cap, max(est * 3 // 2, 16 * 2 ** 20)))

    return pl.pallas_call(
        kernel,
        out_shape=jax.ShapeDtypeStruct((B, Cin, T), jnp.float32),
        grid=(B // Bb,),
        in_specs=[
            pl.BlockSpec(memory_space=pltpu.MemorySpace.SMEM),   # PReLU slopes
            pl.BlockSpec((Bb, Cin, T), lambda b: (b, 0, 0)),     # x
            pl.BlockSpec((Bb, Cc, 1), lambda b: (b, 0, 0)),      # per-batch bias1
            full((Cc, Cin)),                                     # w1 (x part)
            full((Cc, K + 3)),                                   # packed per-channel vecs
            full((Cin, Cc)),                                     # W3 * g2^T
            full((Cin, 2)),                                      # [b3', rowsum(W3g2)]
        ],
        out_specs=pl.BlockSpec((Bb, Cin, T), lambda b: (b, 0, 0)),
        compiler_params=pltpu.CompilerParams(
            dimension_semantics=("parallel",),
            vmem_limit_bytes=vmem_limit),
        cost_estimate=pl.CostEstimate(flops=int(flops),
                                      transcendentals=2 * B,
                                      bytes_accessed=int(bytes_accessed)),
    )(prelu, x, bias1, w1x, vecs, w3g2, obias)


def tcn_reference(x, ref, params, *, kernel_size, dilation):
    """Pure-JAX reference mirroring the PyTorch module."""
    B, Cin, T = x.shape
    pad = dilation * (kernel_size - 1) // 2
    aux = jnp.broadcast_to(ref[:, :, None], (B, ref.shape[1], T))
    y = jnp.concatenate([x, aux], axis=1)

    h = jnp.einsum("oc,bct->bot", params["w1"], y) + params["b1"][None]
    h = jnp.where(h > 0, h, params["a1"][0, 0] * h)
    mean = jnp.mean(h, axis=(1, 2), keepdims=True)
    var = jnp.mean((h - mean) ** 2, axis=(1, 2), keepdims=True)
    h = params["g1"][None] * (h - mean) / jnp.sqrt(var + EPS) + params["be1"][None]

    hp = jnp.pad(h, ((0, 0), (0, 0), (pad, pad)))
    acc = jnp.zeros_like(h) + params["bd"][None]
    for k in range(kernel_size):
        acc = acc + params["wd"][None, :, k:k + 1] * hp[:, :, k * dilation:k * dilation + T]

    h2 = jnp.where(acc > 0, acc, params["a2"][0, 0] * acc)
    mean2 = jnp.mean(h2, axis=(1, 2), keepdims=True)
    var2 = jnp.mean((h2 - mean2) ** 2, axis=(1, 2), keepdims=True)
    h2 = params["g2"][None] * (h2 - mean2) / jnp.sqrt(var2 + EPS) + params["be2"][None]

    out = jnp.einsum("oc,bct->bot", params["w3"], h2) + params["b3"][None]
    return x + out


def make_params(key, in_channels, spk_embed_dim, conv_channels, kernel_size):
    ks = jax.random.split(key, 6)
    f32 = jnp.float32
    return {
        # Conv1d(in+spk, conv, 1)
        "w1": 0.1 * jax.random.normal(ks[0], (conv_channels, in_channels + spk_embed_dim), f32),
        "b1": 0.05 * jax.random.normal(ks[1], (conv_channels, 1), f32),
        # PReLU (default init 0.25, single parameter)
        "a1": jnp.full((1, 1), 0.25, f32),
        # GlobalLayerNorm affine (gamma=1, beta=0 at init)
        "g1": jnp.ones((conv_channels, 1), f32),
        "be1": jnp.zeros((conv_channels, 1), f32),
        # depthwise Conv1d(conv, conv, K, groups=conv) -> weight (conv, 1, K)
        "wd": 0.1 * jax.random.normal(ks[2], (conv_channels, kernel_size), f32),
        "bd": 0.05 * jax.random.normal(ks[3], (conv_channels, 1), f32),
        "a2": jnp.full((1, 1), 0.25, f32),
        "g2": jnp.ones((conv_channels, 1), f32),
        "be2": jnp.zeros((conv_channels, 1), f32),
        # Conv1d(conv, in, 1)
        "w3": 0.1 * jax.random.normal(ks[4], (in_channels, conv_channels), f32),
        "b3": 0.05 * jax.random.normal(ks[5], (in_channels, 1), f32),
    }


if __name__ == "__main__":
    B = 2
    in_channels = 8
    spk_embed_dim = 8
    conv_channels = 16
    kernel_size = 3
    dilation = 2
    T = 128   # 128-multiple time length -> lane-dense tiles / unmasked stores

    key = jax.random.PRNGKey(0)
    kx, kr, kp = jax.random.split(key, 3)
    x = jax.random.normal(kx, (B, in_channels, T), jnp.float32)
    ref = jax.random.normal(kr, (B, spk_embed_dim), jnp.float32)
    params = make_params(kp, in_channels, spk_embed_dim, conv_channels, kernel_size)

    expected = tcn_reference(x, ref, params, kernel_size=kernel_size, dilation=dilation)

    # f32 MXU operands + batch blocking (amortizes per-grid-step overhead at
    # small shapes): exact parity with the f32 reference.
    out = tcn_forward(x, ref, params, kernel_size=kernel_size, dilation=dilation,
                      batch_block=2)
    out = jax.block_until_ready(out)
    assert out.shape == (B, in_channels, T)
    assert jnp.allclose(out, expected, rtol=1e-4, atol=2e-4), "mismatch vs reference (f32)"

    # bf16 MXU operands (recommended default on v6e/v7x), per-batch grid path:
    # validated at a looser tolerance.
    out_bf16 = tcn_forward(x, ref, params, kernel_size=kernel_size,
                           dilation=dilation, matmul_dtype=jnp.bfloat16,
                           batch_block=1)
    out_bf16 = jax.block_until_ready(out_bf16)
    assert jnp.allclose(out_bf16, expected, rtol=1e-1, atol=1e-1), "mismatch vs reference (bf16)"

    print("KERNEL_OK")
</pallas_src>

<mosaic_0001>
module attributes {stable_mosaic.version = 11 : i64} {
  func.func @_tcn_kernel(%arg0: i32, %arg1: memref<2xf32, #tpu.memory_space<smem>>, %arg2: memref<2x8x128xf32, #tpu.memory_space<vmem>>, %arg3: memref<2x16x1xf32, #tpu.memory_space<vmem>>, %arg4: memref<16x8xf32, #tpu.memory_space<vmem>>, %arg5: memref<16x6xf32, #tpu.memory_space<vmem>>, %arg6: memref<8x16xf32, #tpu.memory_space<vmem>>, %arg7: memref<8x2xf32, #tpu.memory_space<vmem>>, %arg8: memref<2x8x128xf32, #tpu.memory_space<vmem>>) attributes {dimension_semantics = [#tpu.dimension_semantics<parallel>], iteration_bounds = array<i64: 1>, scalar_prefetch = 0 : i64, scratch_operands = 0 : i64, tpu.core_type = #tpu.core_type<tc>, window_params = [{transform_indices = @transform_0, window_bounds = array<i64: 2>}, {transform_indices = @transform_1, window_bounds = array<i64: 2, 8, 128>}, {transform_indices = @transform_2, window_bounds = array<i64: 2, 16, 1>}, {pipeline_mode = #tpu.pipeline_mode<synchronous>, transform_indices = @transform_3, window_bounds = array<i64: 16, 8>}, {pipeline_mode = #tpu.pipeline_mode<synchronous>, transform_indices = @transform_4, window_bounds = array<i64: 16, 6>}, {pipeline_mode = #tpu.pipeline_mode<synchronous>, transform_indices = @transform_5, window_bounds = array<i64: 8, 16>}, {pipeline_mode = #tpu.pipeline_mode<synchronous>, transform_indices = @transform_6, window_bounds = array<i64: 8, 2>}, {transform_indices = @transform_7, window_bounds = array<i64: 2, 8, 128>}]} {
    %c0 = arith.constant 0 : index
    %c0_0 = arith.constant 0 : index
    %0 = vector.load %arg5[%c0, %c0_0] : memref<16x6xf32, #tpu.memory_space<vmem>>, vector<16x6xf32>
    %1 = vector.extract_strided_slice %0 {offsets = [0, 0], sizes = [16, 3], strides = [1, 1]} : vector<16x6xf32> to vector<16x3xf32>
    %2 = vector.extract_strided_slice %0 {offsets = [0, 3], sizes = [16, 1], strides = [1, 1]} : vector<16x6xf32> to vector<16x1xf32>
    %3 = vector.extract_strided_slice %0 {offsets = [0, 4], sizes = [16, 1], strides = [1, 1]} : vector<16x6xf32> to vector<16x1xf32>
    %4 = vector.extract_strided_slice %0 {offsets = [0, 5], sizes = [16, 1], strides = [1, 1]} : vector<16x6xf32> to vector<16x1xf32>
    %c0_1 = arith.constant 0 : index
    %c0_2 = arith.constant 0 : index
    %5 = vector.load %arg7[%c0_1, %c0_2] : memref<8x2xf32, #tpu.memory_space<vmem>>, vector<8x2xf32>
    %6 = vector.extract_strided_slice %5 {offsets = [0, 0], sizes = [8, 1], strides = [1, 1]} : vector<8x2xf32> to vector<8x1xf32>
    %7 = vector.extract_strided_slice %5 {offsets = [0, 1], sizes = [8, 1], strides = [1, 1]} : vector<8x2xf32> to vector<8x1xf32>
    %c0_3 = arith.constant 0 : index
    %8 = memref.load %arg1[%c0_3] : memref<2xf32, #tpu.memory_space<smem>>
    %c1 = arith.constant 1 : index
    %9 = memref.load %arg1[%c1] : memref<2xf32, #tpu.memory_space<smem>>
    %cst = arith.constant 1.000000e+00 : f32
    %10 = vector.broadcast %cst : f32 to vector<1x16xf32>
    %11 = tpu.iota {dimensions = array<i32: 1>} : vector<1x128xi32>
    %c0_4 = arith.constant 0 : index
    %c0_5 = arith.constant 0 : index
    %12 = vector.load %arg4[%c0_4, %c0_5] : memref<16x8xf32, #tpu.memory_space<vmem>>, vector<16x8xf32>
    %c0_6 = arith.constant 0 : index
    %c0_7 = arith.constant 0 : index
    %c0_8 = arith.constant 0 : index
    %13 = vector.load %arg2[%c0_6, %c0_7, %c0_8] : memref<2x8x128xf32, #tpu.memory_space<vmem>>, vector<1x8x128xf32>
    %14 = vector.shape_cast %13 : vector<1x8x128xf32> to vector<8x128xf32>
    %cst_9 = arith.constant dense<0.000000e+00> : vector<16x128xf32>
    %15 = tpu.matmul %12, %14, %cst_9 {dimension_numbers = #tpu.dot_dimension_numbers<[1], [0], [0], [1], [0, 0, 1, 1], [], []>} : vector<16x8xf32>, vector<8x128xf32>, vector<16x128xf32> -> vector<16x128xf32>
    %c0_10 = arith.constant 0 : index
    %c0_11 = arith.constant 0 : index
    %c0_12 = arith.constant 0 : index
    %16 = vector.load %arg3[%c0_10, %c0_11, %c0_12] : memref<2x16x1xf32, #tpu.memory_space<vmem>>, vector<1x16x1xf32>
    %17 = vector.shape_cast %16 : vector<1x16x1xf32> to vector<16x1xf32>
    %18 = vector.broadcast %17 : vector<16x1xf32> to vector<16x128xf32>
    %19 = arith.addf %15, %18 : vector<16x128xf32>
    %cst_13 = arith.constant 0.000000e+00 : f32
    %20 = vector.broadcast %cst_13 : f32 to vector<16x128xf32>
    %21 = arith.cmpf ogt, %19, %20 : vector<16x128xf32>
    %22 = vector.broadcast %8 : f32 to vector<16x128xf32>
    %23 = arith.mulf %22, %19 : vector<16x128xf32>
    %24 = arith.select %21, %19, %23 : vector<16x128xi1>, vector<16x128xf32>
    %cst_14 = arith.constant dense<0.000000e+00> : vector<1x128xf32>
    %25 = tpu.matmul %10, %24, %cst_14 {dimension_numbers = #tpu.dot_dimension_numbers<[1], [0], [0], [1], [0, 0, 1, 1], [], []>} : vector<1x16xf32>, vector<16x128xf32>, vector<1x128xf32> -> vector<1x128xf32>
    %26 = vector.shape_cast %25 : vector<1x128xf32> to vector<1x1x128xf32>
    %cst_15 = arith.constant dense<0.000000e+00> : vector<1xf32>
    %27 = vector.multi_reduction <add>, %26, %cst_15 [1, 2] : vector<1x1x128xf32> to vector<1xf32>
    %28 = vector.shape_cast %27 : vector<1xf32> to vector<1x1x1xf32>
    %29 = vector.extract %28[0, 0, 0] : f32 from vector<1x1x1xf32>
    %30 = arith.mulf %24, %24 : vector<16x128xf32>
    %cst_16 = arith.constant dense<0.000000e+00> : vector<1x128xf32>
    %31 = tpu.matmul %10, %30, %cst_16 {dimension_numbers = #tpu.dot_dimension_numbers<[1], [0], [0], [1], [0, 0, 1, 1], [], []>} : vector<1x16xf32>, vector<16x128xf32>, vector<1x128xf32> -> vector<1x128xf32>
    %32 = vector.shape_cast %31 : vector<1x128xf32> to vector<1x1x128xf32>
    %cst_17 = arith.constant dense<0.000000e+00> : vector<1xf32>
    %33 = vector.multi_reduction <add>, %32, %cst_17 [1, 2] : vector<1x1x128xf32> to vector<1xf32>
    %34 = vector.shape_cast %33 : vector<1xf32> to vector<1x1x1xf32>
    %35 = vector.extract %34[0, 0, 0] : f32 from vector<1x1x1xf32>
    %cst_18 = arith.constant 4.8828125E-4 : f32
    %36 = arith.mulf %29, %cst_18 : f32
    %cst_19 = arith.constant 4.8828125E-4 : f32
    %37 = arith.mulf %35, %cst_19 : f32
    %38 = arith.mulf %36, %36 : f32
    %39 = arith.subf %37, %38 : f32
    %cst_20 = arith.constant 0.000000e+00 : f32
    %40 = arith.maximumf %39, %cst_20 : f32
    %cst_21 = arith.constant 9.99999974E-6 : f32
    %41 = arith.addf %40, %cst_21 : f32
    %42 = math.rsqrt %41 : f32
    %43 = vector.broadcast %42 : f32 to vector<16x1xf32>
    %44 = arith.mulf %3, %43 : vector<16x1xf32>
    %45 = vector.broadcast %36 : f32 to vector<16x1xf32>
    %46 = arith.mulf %45, %44 : vector<16x1xf32>
    %47 = arith.subf %4, %46 : vector<16x1xf32>
    %48 = vector.broadcast %44 : vector<16x1xf32> to vector<16x128xf32>
    %49 = arith.mulf %24, %48 : vector<16x128xf32>
    %50 = vector.broadcast %47 : vector<16x1xf32> to vector<16x128xf32>
    %51 = arith.addf %49, %50 : vector<16x128xf32>
    %cst_22 = arith.constant 0.000000e+00 : f32
    %52 = vector.broadcast %cst_22 : f32 to vector<16x128xf32>
    %c2_i32 = arith.constant 2 : i32
    %53 = tpu.dynamic_rotate %51 by %c2_i32 dim 1 : vector<16x128xf32>, i32 -> vector<16x128xf32>
    %c2_i32_23 = arith.constant 2 : i32
    %54 = vector.broadcast %c2_i32_23 : i32 to vector<1x128xi32>
    %55 = arith.cmpi sge, %11, %54 : vector<1x128xi32>
    %cst_24 = arith.constant 0.000000e+00 : f32
    %56 = vector.shape_cast %55 : vector<1x128xi1> to vector<1x128xi1>
    %57 = vector.broadcast %56 : vector<1x128xi1> to vector<16x128xi1>
    %58 = vector.broadcast %cst_24 : f32 to vector<16x128xf32>
    %59 = arith.select %57, %53, %58 : vector<16x128xi1>, vector<16x128xf32>
    %60 = vector.extract_strided_slice %1 {offsets = [0, 0], sizes = [16, 1], strides = [1, 1]} : vector<16x3xf32> to vector<16x1xf32>
    %61 = vector.broadcast %60 : vector<16x1xf32> to vector<16x128xf32>
    %62 = arith.mulf %61, %59 : vector<16x128xf32>
    %63 = arith.addf %52, %62 : vector<16x128xf32>
    %64 = vector.extract_strided_slice %1 {offsets = [0, 1], sizes = [16, 1], strides = [1, 1]} : vector<16x3xf32> to vector<16x1xf32>
    %65 = vector.broadcast %64 : vector<16x1xf32> to vector<16x128xf32>
    %66 = arith.mulf %65, %51 : vector<16x128xf32>
    %67 = arith.addf %63, %66 : vector<16x128xf32>
    %c126_i32 = arith.constant 126 : i32
    %68 = tpu.dynamic_rotate %51 by %c126_i32 dim 1 : vector<16x128xf32>, i32 -> vector<16x128xf32>
    %c126_i32_25 = arith.constant 126 : i32
    %69 = vector.broadcast %c126_i32_25 : i32 to vector<1x128xi32>
    %70 = arith.cmpi slt, %11, %69 : vector<1x128xi32>
    %cst_26 = arith.constant 0.000000e+00 : f32
    %71 = vector.shape_cast %70 : vector<1x128xi1> to vector<1x128xi1>
    %72 = vector.broadcast %71 : vector<1x128xi1> to vector<16x128xi1>
    %73 = vector.broadcast %cst_26 : f32 to vector<16x128xf32>
    %74 = arith.select %72, %68, %73 : vector<16x128xi1>, vector<16x128xf32>
    %75 = vector.extract_strided_slice %1 {offsets = [0, 2], sizes = [16, 1], strides = [1, 1]} : vector<16x3xf32> to vector<16x1xf32>
    %76 = vector.broadcast %75 : vector<16x1xf32> to vector<16x128xf32>
    %77 = arith.mulf %76, %74 : vector<16x128xf32>
    %78 = arith.addf %67, %77 : vector<16x128xf32>
    %79 = vector.broadcast %2 : vector<16x1xf32> to vector<16x128xf32>
    %80 = arith.addf %78, %79 : vector<16x128xf32>
    %cst_27 = arith.constant 0.000000e+00 : f32
    %81 = vector.broadcast %cst_27 : f32 to vector<16x128xf32>
    %82 = arith.cmpf ogt, %80, %81 : vector<16x128xf32>
    %83 = vector.broadcast %9 : f32 to vector<16x128xf32>
    %84 = arith.mulf %83, %80 : vector<16x128xf32>
    %85 = arith.select %82, %80, %84 : vector<16x128xi1>, vector<16x128xf32>
    %cst_28 = arith.constant dense<0.000000e+00> : vector<1x128xf32>
    %86 = tpu.matmul %10, %85, %cst_28 {dimension_numbers = #tpu.dot_dimension_numbers<[1], [0], [0], [1], [0, 0, 1, 1], [], []>} : vector<1x16xf32>, vector<16x128xf32>, vector<1x128xf32> -> vector<1x128xf32>
    %87 = vector.shape_cast %86 : vector<1x128xf32> to vector<1x1x128xf32>
    %cst_29 = arith.constant dense<0.000000e+00> : vector<1xf32>
    %88 = vector.multi_reduction <add>, %87, %cst_29 [1, 2] : vector<1x1x128xf32> to vector<1xf32>
    %89 = vector.shape_cast %88 : vector<1xf32> to vector<1x1x1xf32>
    %90 = vector.extract %89[0, 0, 0] : f32 from vector<1x1x1xf32>
    %91 = arith.mulf %85, %85 : vector<16x128xf32>
    %cst_30 = arith.constant dense<0.000000e+00> : vector<1x128xf32>
    %92 = tpu.matmul %10, %91, %cst_30 {dimension_numbers = #tpu.dot_dimension_numbers<[1], [0], [0], [1], [0, 0, 1, 1], [], []>} : vector<1x16xf32>, vector<16x128xf32>, vector<1x128xf32> -> vector<1x128xf32>
    %93 = vector.shape_cast %92 : vector<1x128xf32> to vector<1x1x128xf32>
    %cst_31 = arith.constant dense<0.000000e+00> : vector<1xf32>
    %94 = vector.multi_reduction <add>, %93, %cst_31 [1, 2] : vector<1x1x128xf32> to vector<1xf32>
    %95 = vector.shape_cast %94 : vector<1xf32> to vector<1x1x1xf32>
    %96 = vector.extract %95[0, 0, 0] : f32 from vector<1x1x1xf32>
    %cst_32 = arith.constant 4.8828125E-4 : f32
    %97 = arith.mulf %90, %cst_32 : f32
    %cst_33 = arith.constant 4.8828125E-4 : f32
    %98 = arith.mulf %96, %cst_33 : f32
    %99 = arith.mulf %97, %97 : f32
    %100 = arith.subf %98, %99 : f32
    %cst_34 = arith.constant 0.000000e+00 : f32
    %101 = arith.maximumf %100, %cst_34 : f32
    %cst_35 = arith.constant 9.99999974E-6 : f32
    %102 = arith.addf %101, %cst_35 : f32
    %103 = math.rsqrt %102 : f32
    %c0_36 = arith.constant 0 : index
    %c0_37 = arith.constant 0 : index
    %104 = vector.load %arg6[%c0_36, %c0_37] : memref<8x16xf32, #tpu.memory_space<vmem>>, vector<8x16xf32>
    %cst_38 = arith.constant dense<0.000000e+00> : vector<8x128xf32>
    %105 = tpu.matmul %104, %85, %cst_38 {dimension_numbers = #tpu.dot_dimension_numbers<[1], [0], [0], [1], [0, 0, 1, 1], [], []>} : vector<8x16xf32>, vector<16x128xf32>, vector<8x128xf32> -> vector<8x128xf32>
    %106 = vector.broadcast %103 : f32 to vector<8x128xf32>
    %107 = arith.mulf %106, %105 : vector<8x128xf32>
    %108 = arith.mulf %103, %97 : f32
    %109 = vector.broadcast %108 : f32 to vector<8x1xf32>
    %110 = arith.mulf %109, %7 : vector<8x1xf32>
    %111 = arith.subf %6, %110 : vector<8x1xf32>
    %112 = vector.broadcast %111 : vector<8x1xf32> to vector<8x128xf32>
    %113 = arith.addf %107, %112 : vector<8x128xf32>
    %c0_39 = arith.constant 0 : index
    %c0_40 = arith.constant 0 : index
    %c0_41 = arith.constant 0 : index
    %114 = vector.load %arg2[%c0_39, %c0_40, %c0_41] : memref<2x8x128xf32, #tpu.memory_space<vmem>>, vector<1x8x128xf32>
    %115 = vector.shape_cast %114 : vector<1x8x128xf32> to vector<8x128xf32>
    %116 = arith.addf %115, %113 : vector<8x128xf32>
    %c0_42 = arith.constant 0 : index
    %c0_43 = arith.constant 0 : index
    %c0_44 = arith.constant 0 : index
    %117 = vector.load %arg8[%c0_42, %c0_43, %c0_44] : memref<2x8x128xf32, #tpu.memory_space<vmem>>, vector<1x8x128xf32>
    %118 = vector.shape_cast %117 : vector<1x8x128xf32> to vector<8x128xf32>
    %119 = vector.shape_cast %116 : vector<8x128xf32> to vector<1x8x128xf32>
    tpu.vector_store %arg8[%c0_42, %c0_43, %c0_44], %119 {strides = array<i32>} : memref<2x8x128xf32, #tpu.memory_space<vmem>>, vector<1x8x128xf32>,
    %c0_45 = arith.constant 0 : index
    %c0_46 = arith.constant 0 : index
    %120 = vector.load %arg4[%c0_45, %c0_46] : memref<16x8xf32, #tpu.memory_space<vmem>>, vector<16x8xf32>
    %c1_47 = arith.constant 1 : index
    %c0_48 = arith.constant 0 : index
    %c0_49 = arith.constant 0 : index
    %121 = vector.load %arg2[%c1_47, %c0_48, %c0_49] : memref<2x8x128xf32, #tpu.memory_space<vmem>>, vector<1x8x128xf32>
    %122 = vector.shape_cast %121 : vector<1x8x128xf32> to vector<8x128xf32>
    %cst_50 = arith.constant dense<0.000000e+00> : vector<16x128xf32>
    %123 = tpu.matmul %120, %122, %cst_50 {dimension_numbers = #tpu.dot_dimension_numbers<[1], [0], [0], [1], [0, 0, 1, 1], [], []>} : vector<16x8xf32>, vector<8x128xf32>, vector<16x128xf32> -> vector<16x128xf32>
    %c1_51 = arith.constant 1 : index
    %c0_52 = arith.constant 0 : index
    %c0_53 = arith.constant 0 : index
    %124 = vector.load %arg3[%c1_51, %c0_52, %c0_53] : memref<2x16x1xf32, #tpu.memory_space<vmem>>, vector<1x16x1xf32>
    %125 = vector.shape_cast %124 : vector<1x16x1xf32> to vector<16x1xf32>
    %126 = vector.broadcast %125 : vector<16x1xf32> to vector<16x128xf32>
    %127 = arith.addf %123, %126 : vector<16x128xf32>
    %cst_54 = arith.constant 0.000000e+00 : f32
    %128 = vector.broadcast %cst_54 : f32 to vector<16x128xf32>
    %129 = arith.cmpf ogt, %127, %128 : vector<16x128xf32>
    %130 = vector.broadcast %8 : f32 to vector<16x128xf32>
    %131 = arith.mulf %130, %127 : vector<16x128xf32>
    %132 = arith.select %129, %127, %131 : vector<16x128xi1>, vector<16x128xf32>
    %cst_55 = arith.constant dense<0.000000e+00> : vector<1x128xf32>
    %133 = tpu.matmul %10, %132, %cst_55 {dimension_numbers = #tpu.dot_dimension_numbers<[1], [0], [0], [1], [0, 0, 1, 1], [], []>} : vector<1x16xf32>, vector<16x128xf32>, vector<1x128xf32> -> vector<1x128xf32>
    %134 = vector.shape_cast %133 : vector<1x128xf32> to vector<1x1x128xf32>
    %cst_56 = arith.constant dense<0.000000e+00> : vector<1xf32>
    %135 = vector.multi_reduction <add>, %134, %cst_56 [1, 2] : vector<1x1x128xf32> to vector<1xf32>
    %136 = vector.shape_cast %135 : vector<1xf32> to vector<1x1x1xf32>
    %137 = vector.extract %136[0, 0, 0] : f32 from vector<1x1x1xf32>
    %138 = arith.mulf %132, %132 : vector<16x128xf32>
    %cst_57 = arith.constant dense<0.000000e+00> : vector<1x128xf32>
    %139 = tpu.matmul %10, %138, %cst_57 {dimension_numbers = #tpu.dot_dimension_numbers<[1], [0], [0], [1], [0, 0, 1, 1], [], []>} : vector<1x16xf32>, vector<16x128xf32>, vector<1x128xf32> -> vector<1x128xf32>
    %140 = vector.shape_cast %139 : vector<1x128xf32> to vector<1x1x128xf32>
    %cst_58 = arith.constant dense<0.000000e+00> : vector<1xf32>
    %141 = vector.multi_reduction <add>, %140, %cst_58 [1, 2] : vector<1x1x128xf32> to vector<1xf32>
    %142 = vector.shape_cast %141 : vector<1xf32> to vector<1x1x1xf32>
    %143 = vector.extract %142[0, 0, 0] : f32 from vector<1x1x1xf32>
    %cst_59 = arith.constant 4.8828125E-4 : f32
    %144 = arith.mulf %137, %cst_59 : f32
    %cst_60 = arith.constant 4.8828125E-4 : f32
    %145 = arith.mulf %143, %cst_60 : f32
    %146 = arith.mulf %144, %144 : f32
    %147 = arith.subf %145, %146 : f32
    %cst_61 = arith.constant 0.000000e+00 : f32
    %148 = arith.maximumf %147, %cst_61 : f32
    %cst_62 = arith.constant 9.99999974E-6 : f32
    %149 = arith.addf %148, %cst_62 : f32
    %150 = math.rsqrt %149 : f32
    %151 = vector.broadcast %150 : f32 to vector<16x1xf32>
    %152 = arith.mulf %3, %151 : vector<16x1xf32>
    %153 = vector.broadcast %144 : f32 to vector<16x1xf32>
    %154 = arith.mulf %153, %152 : vector<16x1xf32>
    %155 = arith.subf %4, %154 : vector<16x1xf32>
    %156 = vector.broadcast %152 : vector<16x1xf32> to vector<16x128xf32>
    %157 = arith.mulf %132, %156 : vector<16x128xf32>
    %158 = vector.broadcast %155 : vector<16x1xf32> to vector<16x128xf32>
    %159 = arith.addf %157, %158 : vector<16x128xf32>
    %cst_63 = arith.constant 0.000000e+00 : f32
    %160 = vector.broadcast %cst_63 : f32 to vector<16x128xf32>
    %c2_i32_64 = arith.constant 2 : i32
    %161 = tpu.dynamic_rotate %159 by %c2_i32_64 dim 1 : vector<16x128xf32>, i32 -> vector<16x128xf32>
    %c2_i32_65 = arith.constant 2 : i32
    %162 = vector.broadcast %c2_i32_65 : i32 to vector<1x128xi32>
    %163 = arith.cmpi sge, %11, %162 : vector<1x128xi32>
    %cst_66 = arith.constant 0.000000e+00 : f32
    %164 = vector.shape_cast %163 : vector<1x128xi1> to vector<1x128xi1>
    %165 = vector.broadcast %164 : vector<1x128xi1> to vector<16x128xi1>
    %166 = vector.broadcast %cst_66 : f32 to vector<16x128xf32>
    %167 = arith.select %165, %161, %166 : vector<16x128xi1>, vector<16x128xf32>
    %168 = vector.extract_strided_slice %1 {offsets = [0, 0], sizes = [16, 1], strides = [1, 1]} : vector<16x3xf32> to vector<16x1xf32>
    %169 = vector.broadcast %168 : vector<16x1xf32> to vector<16x128xf32>
    %170 = arith.mulf %169, %167 : vector<16x128xf32>
    %171 = arith.addf %160, %170 : vector<16x128xf32>
    %172 = vector.extract_strided_slice %1 {offsets = [0, 1], sizes = [16, 1], strides = [1, 1]} : vector<16x3xf32> to vector<16x1xf32>
    %173 = vector.broadcast %172 : vector<16x1xf32> to vector<16x128xf32>
    %174 = arith.mulf %173, %159 : vector<16x128xf32>
    %175 = arith.addf %171, %174 : vector<16x128xf32>
    %c126_i32_67 = arith.constant 126 : i32
    %176 = tpu.dynamic_rotate %159 by %c126_i32_67 dim 1 : vector<16x128xf32>, i32 -> vector<16x128xf32>
    %c126_i32_68 = arith.constant 126 : i32
    %177 = vector.broadcast %c126_i32_68 : i32 to vector<1x128xi32>
    %178 = arith.cmpi slt, %11, %177 : vector<1x128xi32>
    %cst_69 = arith.constant 0.000000e+00 : f32
    %179 = vector.shape_cast %178 : vector<1x128xi1> to vector<1x128xi1>
    %180 = vector.broadcast %179 : vector<1x128xi1> to vector<16x128xi1>
    %181 = vector.broadcast %cst_69 : f32 to vector<16x128xf32>
    %182 = arith.select %180, %176, %181 : vector<16x128xi1>, vector<16x128xf32>
    %183 = vector.extract_strided_slice %1 {offsets = [0, 2], sizes = [16, 1], strides = [1, 1]} : vector<16x3xf32> to vector<16x1xf32>
    %184 = vector.broadcast %183 : vector<16x1xf32> to vector<16x128xf32>
    %185 = arith.mulf %184, %182 : vector<16x128xf32>
    %186 = arith.addf %175, %185 : vector<16x128xf32>
    %187 = vector.broadcast %2 : vector<16x1xf32> to vector<16x128xf32>
    %188 = arith.addf %186, %187 : vector<16x128xf32>
    %cst_70 = arith.constant 0.000000e+00 : f32
    %189 = vector.broadcast %cst_70 : f32 to vector<16x128xf32>
    %190 = arith.cmpf ogt, %188, %189 : vector<16x128xf32>
    %191 = vector.broadcast %9 : f32 to vector<16x128xf32>
    %192 = arith.mulf %191, %188 : vector<16x128xf32>
    %193 = arith.select %190, %188, %192 : vector<16x128xi1>, vector<16x128xf32>
    %cst_71 = arith.constant dense<0.000000e+00> : vector<1x128xf32>
    %194 = tpu.matmul %10, %193, %cst_71 {dimension_numbers = #tpu.dot_dimension_numbers<[1], [0], [0], [1], [0, 0, 1, 1], [], []>} : vector<1x16xf32>, vector<16x128xf32>, vector<1x128xf32> -> vector<1x128xf32>
    %195 = vector.shape_cast %194 : vector<1x128xf32> to vector<1x1x128xf32>
    %cst_72 = arith.constant dense<0.000000e+00> : vector<1xf32>
    %196 = vector.multi_reduction <add>, %195, %cst_72 [1, 2] : vector<1x1x128xf32> to vector<1xf32>
    %197 = vector.shape_cast %196 : vector<1xf32> to vector<1x1x1xf32>
    %198 = vector.extract %197[0, 0, 0] : f32 from vector<1x1x1xf32>
    %199 = arith.mulf %193, %193 : vector<16x128xf32>
    %cst_73 = arith.constant dense<0.000000e+00> : vector<1x128xf32>
    %200 = tpu.matmul %10, %199, %cst_73 {dimension_numbers = #tpu.dot_dimension_numbers<[1], [0], [0], [1], [0, 0, 1, 1], [], []>} : vector<1x16xf32>, vector<16x128xf32>, vector<1x128xf32> -> vector<1x128xf32>
    %201 = vector.shape_cast %200 : vector<1x128xf32> to vector<1x1x128xf32>
    %cst_74 = arith.constant dense<0.000000e+00> : vector<1xf32>
    %202 = vector.multi_reduction <add>, %201, %cst_74 [1, 2] : vector<1x1x128xf32> to vector<1xf32>
    %203 = vector.shape_cast %202 : vector<1xf32> to vector<1x1x1xf32>
    %204 = vector.extract %203[0, 0, 0] : f32 from vector<1x1x1xf32>
    %cst_75 = arith.constant 4.8828125E-4 : f32
    %205 = arith.mulf %198, %cst_75 : f32
    %cst_76 = arith.constant 4.8828125E-4 : f32
    %206 = arith.mulf %204, %cst_76 : f32
    %207 = arith.mulf %205, %205 : f32
    %208 = arith.subf %206, %207 : f32
    %cst_77 = arith.constant 0.000000e+00 : f32
    %209 = arith.maximumf %208, %cst_77 : f32
    %cst_78 = arith.constant 9.99999974E-6 : f32
    %210 = arith.addf %209, %cst_78 : f32
    %211 = math.rsqrt %210 : f32
    %c0_79 = arith.constant 0 : index
    %c0_80 = arith.constant 0 : index
    %212 = vector.load %arg6[%c0_79, %c0_80] : memref<8x16xf32, #tpu.memory_space<vmem>>, vector<8x16xf32>
    %cst_81 = arith.constant dense<0.000000e+00> : vector<8x128xf32>
    %213 = tpu.matmul %212, %193, %cst_81 {dimension_numbers = #tpu.dot_dimension_numbers<[1], [0], [0], [1], [0, 0, 1, 1], [], []>} : vector<8x16xf32>, vector<16x128xf32>, vector<8x128xf32> -> vector<8x128xf32>
    %214 = vector.broadcast %211 : f32 to vector<8x128xf32>
    %215 = arith.mulf %214, %213 : vector<8x128xf32>
    %216 = arith.mulf %211, %205 : f32
    %217 = vector.broadcast %216 : f32 to vector<8x1xf32>
    %218 = arith.mulf %217, %7 : vector<8x1xf32>
    %219 = arith.subf %6, %218 : vector<8x1xf32>
    %220 = vector.broadcast %219 : vector<8x1xf32> to vector<8x128xf32>
    %221 = arith.addf %215, %220 : vector<8x128xf32>
    %c1_82 = arith.constant 1 : index
    %c0_83 = arith.constant 0 : index
    %c0_84 = arith.constant 0 : index
    %222 = vector.load %arg2[%c1_82, %c0_83, %c0_84] : memref<2x8x128xf32, #tpu.memory_space<vmem>>, vector<1x8x128xf32>
    %223 = vector.shape_cast %222 : vector<1x8x128xf32> to vector<8x128xf32>
    %224 = arith.addf %223, %221 : vector<8x128xf32>
    %c1_85 = arith.constant 1 : index
    %c0_86 = arith.constant 0 : index
    %c0_87 = arith.constant 0 : index
    %225 = vector.load %arg8[%c1_85, %c0_86, %c0_87] : memref<2x8x128xf32, #tpu.memory_space<vmem>>, vector<1x8x128xf32>
    %226 = vector.shape_cast %225 : vector<1x8x128xf32> to vector<8x128xf32>
    %227 = vector.shape_cast %224 : vector<8x128xf32> to vector<1x8x128xf32>
    tpu.vector_store %arg8[%c1_85, %c0_86, %c0_87], %227 {strides = array<i32>} : memref<2x8x128xf32, #tpu.memory_space<vmem>>, vector<1x8x128xf32>,
    return
  }
  func.func @transform_0(%arg0: i32) -> i32 {
    %c0_i32 = arith.constant 0 : i32
    %c0_i32_0 = arith.constant 0 : i32
    return %c0_i32 : i32
  }
  func.func @transform_1(%arg0: i32) -> (i32, i32, i32) {
    %c0_i32 = arith.constant 0 : i32
    %c0_i32_0 = arith.constant 0 : i32
    %c0_i32_1 = arith.constant 0 : i32
    return %arg0, %c0_i32, %c0_i32_0 : i32, i32, i32
  }
  func.func @transform_2(%arg0: i32) -> (i32, i32, i32) {
    %c0_i32 = arith.constant 0 : i32
    %c0_i32_0 = arith.constant 0 : i32
    %c0_i32_1 = arith.constant 0 : i32
    return %arg0, %c0_i32, %c0_i32_0 : i32, i32, i32
  }
  func.func @transform_3(%arg0: i32) -> (i32, i32) {
    %c0_i32 = arith.constant 0 : i32
    %c0_i32_0 = arith.constant 0 : i32
    %c0_i32_1 = arith.constant 0 : i32
    return %c0_i32, %c0_i32_0 : i32, i32
  }
  func.func @transform_4(%arg0: i32) -> (i32, i32) {
    %c0_i32 = arith.constant 0 : i32
    %c0_i32_0 = arith.constant 0 : i32
    %c0_i32_1 = arith.constant 0 : i32
    return %c0_i32, %c0_i32_0 : i32, i32
  }
  func.func @transform_5(%arg0: i32) -> (i32, i32) {
    %c0_i32 = arith.constant 0 : i32
    %c0_i32_0 = arith.constant 0 : i32
    %c0_i32_1 = arith.constant 0 : i32
    return %c0_i32, %c0_i32_0 : i32, i32
  }
  func.func @transform_6(%arg0: i32) -> (i32, i32) {
    %c0_i32 = arith.constant 0 : i32
    %c0_i32_0 = arith.constant 0 : i32
    %c0_i32_1 = arith.constant 0 : i32
    return %c0_i32, %c0_i32_0 : i32, i32
  }
  func.func @transform_7(%arg0: i32) -> (i32, i32, i32) {
    %c0_i32 = arith.constant 0 : i32
    %c0_i32_0 = arith.constant 0 : i32
    %c0_i32_1 = arith.constant 0 : i32
    return %arg0, %c0_i32, %c0_i32_0 : i32, i32, i32
  }
}

</mosaic_0001>

<llo_original>
// kernel: tpu_custom_call.1
$region0: #{tpu_custom_call.1}
  #allocation0 [shape = 'u32[]', space=smem, size = 0x4, offset = 0x4, fixed_abs, tag = 'smem constant byte address 0x4 - core index']
  #allocation1 [shape = 'u32[144,128]{1,0:T(1,128)}', space=vmem, size = 0x12000, scoped, tag = 'internal scratch']
  %s0 = inlined_call_operand.vmem [shape: f32[2], index: 0, kind: input, shape index: {}]
  %s1 = inlined_call_operand.vmem [shape: f32[2,8,128], index: 1, kind: input, shape index: {}]
  %s2 = inlined_call_operand.vmem [shape: f32[2,16,1], index: 2, kind: input, shape index: {}]
  %s3 = inlined_call_operand.vmem [shape: f32[16,8], index: 3, kind: input, shape index: {}]
  %s4 = inlined_call_operand.vmem [shape: f32[16,6], index: 4, kind: input, shape index: {}]
  %s5 = inlined_call_operand.vmem [shape: f32[8,16], index: 5, kind: input, shape index: {}]
  %s6 = inlined_call_operand.vmem [shape: f32[8,2], index: 6, kind: input, shape index: {}]
  %s7 = inlined_call_operand.hbm [shape: f32[2,8,128], index: 7, kind: output, shape index: {}]
  %s8 = sld [smem:[#allocation0]]
  $region42: #{tpu_custom_call.1} parent=0
    _
  %s10 = ssub.s32 1, %s8
  %s11 = scalar_select 0, %s10, %s8
  $region1: #{tpu_custom_call.1} parent=0
    #allocation2 [shape = 'u8[512]{0}', space=smem, size = 0x200, scoped, tag = 'input window, operand 0, single buffered']
    #allocation3 [shape = 's32[1]{0}', space=sflag, size = 0x4, scoped, tag = 'scoped memory for tpu_custom_call.1']
    #allocation4 [shape = 's32[1]{0}', space=sflag, size = 0x4, scoped, tag = 'scoped memory for tpu_custom_call.1']
    #allocation5 [shape = 'u8[8192]{0}', space=vmem, size = 0x2000, scoped, tag = 'output window, operand 0, single buffered']
    %12 = vsyncpa [#allocation4], 0
    %13 = vsyncpa [#allocation3], 0
    // Predicated region
    $region2: #{tpu_custom_call.1} parent=1 // pred_check
      _
    $region3: #{tpu_custom_call.1} parent=1 // pred_check_branch
      %15 = sbr.rel (0) target = $region5
    $region4: #{tpu_custom_call.1} parent=1 // pred_region
      %s17 = ssub.s32 16, 16
      %18 = vsyncadd [#allocation4], %s17
      %s20 = sshll.u32 %s0, 4
      %s21 = int_to_ptr.vmem [resolvable:$true] %s20
      %23 = dma.vmem_to_smem %s21, 16, [#allocation2], [#allocation4]
    $region5: #{tpu_custom_call.1} parent=1 // pred_fallthru
      _
    // Predicated region
    $region6: #{tpu_custom_call.1} parent=1 // pred_check
      _
    $region7: #{tpu_custom_call.1} parent=1 // pred_check_branch
      %25 = sbr.rel (0) target = $region9
    $region8: #{tpu_custom_call.1} parent=1 // pred_region
      _
    $region9: #{tpu_custom_call.1} parent=1 // pred_fallthru
      _
    // Predicated region
    $region10: #{tpu_custom_call.1} parent=1 // pred_check
      _
    $region11: #{tpu_custom_call.1} parent=1 // pred_check_branch
      %27 = sbr.rel (0) target = $region13
    $region12: #{tpu_custom_call.1} parent=1 // pred_region
      _
    $region13: #{tpu_custom_call.1} parent=1 // pred_fallthru
      _
    // Predicated region
    $region14: #{tpu_custom_call.1} parent=1 // pred_check
      _
    $region15: #{tpu_custom_call.1} parent=1 // pred_check_branch
      %29 = sbr.rel (0) target = $region17
    $region16: #{tpu_custom_call.1} parent=1 // pred_region
      _
    $region17: #{tpu_custom_call.1} parent=1 // pred_fallthru
      _
    // Predicated region
    $region18: #{tpu_custom_call.1} parent=1 // pred_check
      _
    $region19: #{tpu_custom_call.1} parent=1 // pred_check_branch
      %31 = sbr.rel (0) target = $region21
    $region20: #{tpu_custom_call.1} parent=1 // pred_region
      _
    $region21: #{tpu_custom_call.1} parent=1 // pred_fallthru
      _
    // Predicated region
    $region22: #{tpu_custom_call.1} parent=1 // pred_check
      _
    $region23: #{tpu_custom_call.1} parent=1 // pred_check_branch
      %33 = sbr.rel (0) target = $region25
    $region24: #{tpu_custom_call.1} parent=1 // pred_region
      _
    $region25: #{tpu_custom_call.1} parent=1 // pred_fallthru
      _
    // Predicated region
    $region26: #{tpu_custom_call.1} parent=1 // pred_check
      _
    $region27: #{tpu_custom_call.1} parent=1 // pred_check_branch
      %35 = sbr.rel (0) target = $region29
    $region28: #{tpu_custom_call.1} parent=1 // pred_region
      _
    $region29: #{tpu_custom_call.1} parent=1 // pred_fallthru
      _
    // Predicated region
    $region30: #{tpu_custom_call.1} parent=1 // pred_check
      _
    $region31: #{tpu_custom_call.1} parent=1 // pred_check_branch
      %37 = sbr.rel (0) target = $region33
    $region32: #{tpu_custom_call.1} parent=1 // pred_region
      %38 = dma.done [#allocation4], 16
    $region33: #{tpu_custom_call.1} parent=1 // pred_fallthru
      _
    %39 = sfence
    %v40 = vld [vmem:[%s4] sm:$0xff]
    %v41 = vld [vmem:[%s4 + $0x8] sm:$0xff]
    %v42 = vld [vmem:[%s6] sm:$0xff]
    %s43 = sld [smem:[#allocation2]]
    %s44 = sld [smem:[#allocation2 + $0x1]]
    %v45 = vlaneseq
    %v46 = vand.u32 %v45, 127
    %v47 = vld [vmem:[%s3] sm:$0xff]
    %v48 = vld [vmem:[%s3 + $0x8] sm:$0xff]
    %v49 = vld [vmem:[%s1] sm:$0xff]
    %v50 = vld [vmem:[%s2] sm:$0xff]
    %v51 = vld [vmem:[%s2 + $0x8] sm:$0xff]
    %53 = vset.pattern.permute.xlu0 0
    %54 = vperm.xlu0 %53, %v50
    %v55 = vpop.permute.xlu0 %54
    %58 = vset.pattern.permute.xlu0 0
    %59 = vperm.xlu0 %58, %v51
    %v60 = vpop.permute.xlu0 %59
    %vm62 = vcmask 64512
    %v64 = vsel %vm62, %v47, 0
    %v67 = vsel %vm62, %v48, 0
    %69 = vmatprep.subr.mxu0 0.0
    %70 = vmatpush1.msra.mxu0 %v49
    %71 = vmatprep.subr.mxu0 0.0
    %72 = vmatpush1.msra.mxu0 0.0
    %73 = vmatprep.subr.mxu0 0.0
    %74 = vmatpush1.msra.mxu0 0.0
    %75 = vmatprep.subr.mxu0 0.0
    %76 = vmatpush1.msra.mxu0 0.0
    %77 = vmatprep.subr.mxu0 0.0
    %78 = vmatpush1.msra.mxu0 0.0
    %79 = vmatprep.subr.mxu0 0.0
    %80 = vmatpush1.msra.mxu0 0.0
    %81 = vmatprep.subr.mxu0 0.0
    %82 = vmatpush1.msra.mxu0 0.0
    %83 = vmatprep.subr.mxu0 0.0
    %84 = vmatpush1.msra.mxu0 0.0
    %85 = vmatprep.subr.mxu0 0.0
    %86 = vmatpush1.msra.mxu0 0.0
    %87 = vmatprep.subr.mxu0 0.0
    %88 = vmatpush1.msra.mxu0 0.0
    %89 = vmatprep.subr.mxu0 0.0
    %90 = vmatpush1.msra.mxu0 0.0
    %91 = vmatprep.subr.mxu0 0.0
    %92 = vmatpush1.msra.mxu0 0.0
    %93 = vmatprep.subr.mxu0 0.0
    %94 = vmatpush1.msra.mxu0 0.0
    %95 = vmatprep.subr.mxu0 0.0
    %96 = vmatpush1.msra.mxu0 0.0
    %97 = vmatprep.subr.mxu0 0.0
    %98 = vmatpush1.msra.mxu0 0.0
    %99 = vmatprep.subr.mxu0 0.0
    %100 = vmatpush1.msra.mxu0 0.0
    %101 = vmatprep.subr.mxu0 0.0
    %102 = vmatpush1.msra.mxu0 0.0
    %103 = vmatprep.subr.mxu0 0.0
    %104 = vmatpush1.msra.mxu0 0.0
    %105 = vmatprep.subr.mxu0 0.0
    %106 = vmatpush1.msra.mxu0 0.0
    %107 = vmatprep.subr.mxu0 0.0
    %108 = vmatpush1.msra.mxu0 0.0
    %109 = vmatprep.subr.mxu0 0.0
    %110 = vmatpush1.msra.mxu0 0.0
    %111 = vmatprep.subr.mxu0 0.0
    %112 = vmatpush1.msra.mxu0 0.0
    %113 = vmatprep.subr.mxu0 0.0
    %114 = vmatpush1.msra.mxu0 0.0
    %115 = vmatprep.subr.mxu0 0.0
    %116 = vmatpush1.msra.mxu0 0.0
    %117 = vmatprep.subr.mxu0 0.0
    %118 = vmatpush1.msra.mxu0 0.0
    %119 = vmatprep.subr.mxu0 0.0
    %120 = vmatpush1.msra.mxu0 0.0
    %121 = vmatprep.subr.mxu0 0.0
    %122 = vmatpush1.msra.mxu0 0.0
    %123 = vmatprep.subr.mxu0 0.0
    %124 = vmatpush1.msra.mxu0 0.0
    %125 = vmatprep.subr.mxu0 0.0
    %126 = vmatpush1.msra.mxu0 0.0
    %127 = vmatprep.subr.mxu0 0.0
    %128 = vmatpush1.msra.mxu0 0.0
    %129 = vmatprep.subr.mxu0 0.0
    %130 = vmatpush1.msra.mxu0 0.0
    %131 = vmatprep.subr.mxu0 0.0
    %132 = vmatpush1.msra.mxu0 0.0
    %133 = vmatprep.mubr.f32.mxu0 0.0
    %134 = vmatmul.mubr.f32.gmra.mrb[0].mxu0 %v64
    %v135 = vpop.f32.mrb[0].mxu0
    %v136 = vadd.f32 %v55, %v135
    %v137 = vpop.f32.mrb[0].mxu0
    %138 = vmatprep.mubr.f32.mxu0 0.0
    %139 = vmatmul.mubr.f32.gmra.mrb[0].mxu0 %v67
    %v140 = vpop.f32.mrb[0].mxu0
    %v141 = vadd.f32 %v60, %v140
    %v142 = vpop.f32.mrb[0].mxu0
    %143 = vdwg.mxu0
    %vm144 = vcmp.gt.f32.partialorder %v136, 0.0
    %vm145 = vcmp.gt.f32.partialorder %v141, 0.0
    %v146 = vstv %s43
    %v147 = vmul.f32 %v146, %v136
    %v148 = vmul.f32 %v146, %v141
    %v149 = vsel %vm144, %v136, %v147
    %v150 = vsel %vm145, %v141, %v148
    %vm151 = vcmask 130048
    %v153 = vsel %vm151, 1.0, 0
    %155 = vmatprep.subr.mxu0 0.0
    %156 = vmatpush1.msra.mxu0 %v149
    %157 = vmatprep.subr.mxu0 0.0
    %158 = vmatpush1.msra.mxu0 %v150
    %159 = vmatprep.subr.mxu0 0.0
    %160 = vmatpush1.msra.mxu0 0.0
    %161 = vmatprep.subr.mxu0 0.0
    %162 = vmatpush1.msra.mxu0 0.0
    %163 = vmatprep.subr.mxu0 0.0
    %164 = vmatpush1.msra.mxu0 0.0
    %165 = vmatprep.subr.mxu0 0.0
    %166 = vmatpush1.msra.mxu0 0.0
    %167 = vmatprep.subr.mxu0 0.0
    %168 = vmatpush1.msra.mxu0 0.0
    %169 = vmatprep.subr.mxu0 0.0
    %170 = vmatpush1.msra.mxu0 0.0
    %171 = vmatprep.subr.mxu0 0.0
    %172 = vmatpush1.msra.mxu0 0.0
    %173 = vmatprep.subr.mxu0 0.0
    %174 = vmatpush1.msra.mxu0 0.0
    %175 = vmatprep.subr.mxu0 0.0
    %176 = vmatpush1.msra.mxu0 0.0
    %177 = vmatprep.subr.mxu0 0.0
    %178 = vmatpush1.msra.mxu0 0.0
    %179 = vmatprep.subr.mxu0 0.0
    %180 = vmatpush1.msra.mxu0 0.0
    %181 = vmatprep.subr.mxu0 0.0
    %182 = vmatpush1.msra.mxu0 0.0
    %183 = vmatprep.subr.mxu0 0.0
    %184 = vmatpush1.msra.mxu0 0.0
    %185 = vmatprep.subr.mxu0 0.0
    %186 = vmatpush1.msra.mxu0 0.0
    %187 = vmatprep.subr.mxu0 0.0
    %188 = vmatpush1.msra.mxu0 0.0
    %189 = vmatprep.subr.mxu0 0.0
    %190 = vmatpush1.msra.mxu0 0.0
    %191 = vmatprep.subr.mxu0 0.0
    %192 = vmatpush1.msra.mxu0 0.0
    %193 = vmatprep.subr.mxu0 0.0
    %194 = vmatpush1.msra.mxu0 0.0
    %195 = vmatprep.subr.mxu0 0.0
    %196 = vmatpush1.msra.mxu0 0.0
    %197 = vmatprep.subr.mxu0 0.0
    %198 = vmatpush1.msra.mxu0 0.0
    %199 = vmatprep.subr.mxu0 0.0
    %200 = vmatpush1.msra.mxu0 0.0
    %201 = vmatprep.subr.mxu0 0.0
    %202 = vmatpush1.msra.mxu0 0.0
    %203 = vmatprep.subr.mxu0 0.0
    %204 = vmatpush1.msra.mxu0 0.0
    %205 = vmatprep.subr.mxu0 0.0
    %206 = vmatpush1.msra.mxu0 0.0
    %207 = vmatprep.subr.mxu0 0.0
    %208 = vmatpush1.msra.mxu0 0.0
    %209 = vmatprep.subr.mxu0 0.0
    %210 = vmatpush1.msra.mxu0 0.0
    %211 = vmatprep.subr.mxu0 0.0
    %212 = vmatpush1.msra.mxu0 0.0
    %213 = vmatprep.subr.mxu0 0.0
    %214 = vmatpush1.msra.mxu0 0.0
    %215 = vmatprep.subr.mxu0 0.0
    %216 = vmatpush1.msra.mxu0 0.0
    %217 = vmatprep.subr.mxu0 0.0
    %218 = vmatpush1.msra.mxu0 0.0
    %219 = vmatprep.mubr.f32.mxu0 0.0
    %220 = vmatmul.mubr.f32.gmra.mrb[0].mxu0 %v153
    %v221 = vpop.f32.mrb[0].mxu0
    %v222 = vadd.f32 0.0, %v221
    %v223 = vpop.f32.mrb[0].mxu0
    %224 = vdwg.mxu0
    %vm225 = vcmask 1040384
    %v226 = vsel %vm225, %v222, 0.0
    %227 = vadd.xlane.f32.xlu0 %v226
    %v228 = vpop.xlane.xlu0 %227
    %v229 = vrot.slane %v228, 4
    %v230 = vadd.f32 %v228, %v229
    %v231 = vrot.slane %v230, 2
    %v232 = vadd.f32 %v230, %v231
    %v233 = vrot.slane %v232, 1
    %v234 = vadd.f32 %v232, %v233
    %s235 = vtos %v234
    %v236 = vmul.f32 %v149, %v149
    %v237 = vmul.f32 %v150, %v150
    %238 = vmatprep.subr.mxu0 0.0
    %239 = vmatpush1.msra.mxu0 %v236
    %240 = vmatprep.subr.mxu0 0.0
    %241 = vmatpush1.msra.mxu0 %v237
    %242 = vmatprep.subr.mxu0 0.0
    %243 = vmatpush1.msra.mxu0 0.0
    %244 = vmatprep.subr.mxu0 0.0
    %245 = vmatpush1.msra.mxu0 0.0
    %246 = vmatprep.subr.mxu0 0.0
    %247 = vmatpush1.msra.mxu0 0.0
    %248 = vmatprep.subr.mxu0 0.0
    %249 = vmatpush1.msra.mxu0 0.0
    %250 = vmatprep.subr.mxu0 0.0
    %251 = vmatpush1.msra.mxu0 0.0
    %252 = vmatprep.subr.mxu0 0.0
    %253 = vmatpush1.msra.mxu0 0.0
    %254 = vmatprep.subr.mxu0 0.0
    %255 = vmatpush1.msra.mxu0 0.0
    %256 = vmatprep.subr.mxu0 0.0
    %257 = vmatpush1.msra.mxu0 0.0
    %258 = vmatprep.subr.mxu0 0.0
    %259 = vmatpush1.msra.mxu0 0.0
    %260 = vmatprep.subr.mxu0 0.0
    %261 = vmatpush1.msra.mxu0 0.0
    %262 = vmatprep.subr.mxu0 0.0
    %263 = vmatpush1.msra.mxu0 0.0
    %264 = vmatprep.subr.mxu0 0.0
    %265 = vmatpush1.msra.mxu0 0.0
    %266 = vmatprep.subr.mxu0 0.0
    %267 = vmatpush1.msra.mxu0 0.0
    %268 = vmatprep.subr.mxu0 0.0
    %269 = vmatpush1.msra.mxu0 0.0
    %270 = vmatprep.subr.mxu0 0.0
    %271 = vmatpush1.msra.mxu0 0.0
    %272 = vmatprep.subr.mxu0 0.0
    %273 = vmatpush1.msra.mxu0 0.0
    %274 = vmatprep.subr.mxu0 0.0
    %275 = vmatpush1.msra.mxu0 0.0
    %276 = vmatprep.subr.mxu0 0.0
    %277 = vmatpush1.msra.mxu0 0.0
    %278 = vmatprep.subr.mxu0 0.0
    %279 = vmatpush1.msra.mxu0 0.0
    %280 = vmatprep.subr.mxu0 0.0
    %281 = vmatpush1.msra.mxu0 0.0
    %282 = vmatprep.subr.mxu0 0.0
    %283 = vmatpush1.msra.mxu0 0.0
    %284 = vmatprep.subr.mxu0 0.0
    %285 = vmatpush1.msra.mxu0 0.0
    %286 = vmatprep.subr.mxu0 0.0
    %287 = vmatpush1.msra.mxu0 0.0
    %288 = vmatprep.subr.mxu0 0.0
    %289 = vmatpush1.msra.mxu0 0.0
    %290 = vmatprep.subr.mxu0 0.0
    %291 = vmatpush1.msra.mxu0 0.0
    %292 = vmatprep.subr.mxu0 0.0
    %293 = vmatpush1.msra.mxu0 0.0
    %294 = vmatprep.subr.mxu0 0.0
    %295 = vmatpush1.msra.mxu0 0.0
    %296 = vmatprep.subr.mxu0 0.0
    %297 = vmatpush1.msra.mxu0 0.0
    %298 = vmatprep.subr.mxu0 0.0
    %299 = vmatpush1.msra.mxu0 0.0
    %300 = vmatprep.subr.mxu0 0.0
    %301 = vmatpush1.msra.mxu0 0.0
    %302 = vmatprep.mubr.f32.mxu0 0.0
    %303 = vmatmul.mubr.f32.gmra.mrb[0].mxu0 %v153
    %v304 = vpop.f32.mrb[0].mxu0
    %v305 = vadd.f32 0.0, %v304
    %v306 = vpop.f32.mrb[0].mxu0
    %307 = vdwg.mxu0
    %v308 = vsel %vm225, %v305, 0.0
    %309 = vadd.xlane.f32.xlu0 %v308
    %v310 = vpop.xlane.xlu0 %309
    %v311 = vrot.slane %v310, 4
    %v312 = vadd.f32 %v310, %v311
    %v313 = vrot.slane %v312, 2
    %v314 = vadd.f32 %v312, %v313
    %v315 = vrot.slane %v314, 1
    %v316 = vadd.f32 %v314, %v315
    %s317 = vtos %v316
    %s318 = smul.f32 %s235, 0.00048828125
    %s319 = smul.f32 %s317, 0.00048828125
    %s320 = smul.f32 %s318, %s318
    %s321 = ssub.f32 %s319, %s320
    %s322 = smax.f32 %s321, 0.0
    %s323 = sadd.f32 %s322, 1e-05
    %v324 = vstv %s323
    %v325 = vrsqrt.pop %v324
    %s326 = vtos %v325
    %v327 = vstv %s326
    %v328 = vmul.f32 %v40, %v327
    %v329 = vmul.f32 %v41, %v327
    %v330 = vstv %s318
    %v331 = vmul.f32 %v330, %v328
    %v332 = vmul.f32 %v330, %v329
    %335 = vrot.lane.b32.xlu0 %v331, 1
    %v336 = vpop.permute.xlu0 %335
    %337 = vrot.lane.b32.xlu0 %v332, 1
    %v338 = vpop.permute.xlu0 %337
    %v341 = vsub.f32 %v40, %v336
    %v342 = vsub.f32 %v41, %v338
    %344 = vset.pattern.permute.xlu0 4
    %345 = vperm.xlu0 %344, %v328
    %v346 = vpop.permute.xlu0 %345
    %349 = vset.pattern.permute.xlu0 4
    %350 = vperm.xlu0 %349, %v329
    %v351 = vpop.permute.xlu0 %350
    %v353 = vmul.f32 %v149, %v346
    %v354 = vmul.f32 %v150, %v351
    %356 = vset.pattern.permute.xlu0 5
    %357 = vperm.xlu0 %356, %v341
    %v358 = vpop.permute.xlu0 %357
    %361 = vset.pattern.permute.xlu0 5
    %362 = vperm.xlu0 %361, %v342
    %v363 = vpop.permute.xlu0 %362
    %v365 = vadd.f32 %v353, %v358
    %v366 = vadd.f32 %v354, %v363
    %367 = vrot.lane.b32.xlu0 %v365, 2
    %v368 = vpop.permute.xlu0 %367
    %369 = vrot.lane.b32.xlu0 %v366, 2
    %v370 = vpop.permute.xlu0 %369
    %vm371 = vcmp.ge.s32.totalorder %v46, 2
    %v372 = vsel %vm371, 1, 0
    %vm373 = vcmp.eq.s32.totalorder %v372, 1
    %v374 = vsel %vm373, %v368, 0.0
    %v375 = vsel %vm373, %v370, 0.0
    %377 = vset.pattern.permute.xlu0 0
    %378 = vperm.xlu0 %377, %v40
    %v379 = vpop.permute.xlu0 %378
    %382 = vset.pattern.permute.xlu0 0
    %383 = vperm.xlu0 %382, %v41
    %v384 = vpop.permute.xlu0 %383
    %v386 = vmul.f32 %v379, %v374
    %v387 = vmul.f32 %v384, %v375
    %v388 = vadd.f32 %v386, 0.0
    %v389 = vadd.f32 %v387, 0.0
    %390 = vset.pattern.permute.xlu0 1
    %391 = vperm.xlu0 %390, %v40
    %v392 = vpop.permute.xlu0 %391
    %394 = vset.pattern.permute.xlu0 1
    %395 = vperm.xlu0 %394, %v41
    %v396 = vpop.permute.xlu0 %395
    %v398 = vmul.f32 %v392, %v365
    %v399 = vmul.f32 %v396, %v366
    %v400 = vadd.f32 %v388, %v398
    %v401 = vadd.f32 %v389, %v399
    %402 = vrot.lane.b32.xlu0 %v365, 126
    %v403 = vpop.permute.xlu0 %402
    %404 = vrot.lane.b32.xlu0 %v366, 126
    %v405 = vpop.permute.xlu0 %404
    %vm406 = vcmp.lt.s32.totalorder %v46, 126
    %v407 = vsel %vm406, 1, 0
    %vm408 = vcmp.eq.s32.totalorder %v407, 1
    %v409 = vsel %vm408, %v403, 0.0
    %v410 = vsel %vm408, %v405, 0.0
    %411 = vset.pattern.permute.xlu0 2
    %412 = vperm.xlu0 %411, %v40
    %v413 = vpop.permute.xlu0 %412
    %415 = vset.pattern.permute.xlu0 2
    %416 = vperm.xlu0 %415, %v41
    %v417 = vpop.permute.xlu0 %416
    %v419 = vmul.f32 %v413, %v409
    %v420 = vmul.f32 %v417, %v410
    %v421 = vadd.f32 %v400, %v419
    %v422 = vadd.f32 %v401, %v420
    %423 = vset.pattern.permute.xlu0 3
    %424 = vperm.xlu0 %423, %v40
    %v425 = vpop.permute.xlu0 %424
    %427 = vset.pattern.permute.xlu0 3
    %428 = vperm.xlu0 %427, %v41
    %v429 = vpop.permute.xlu0 %428
    %v431 = vadd.f32 %v421, %v425
    %v432 = vadd.f32 %v422, %v429
    %vm433 = vcmp.gt.f32.partialorder %v431, 0.0
    %vm434 = vcmp.gt.f32.partialorder %v432, 0.0
    %v435 = vstv %s44
    %v436 = vmul.f32 %v435, %v431
    %v437 = vmul.f32 %v435, %v432
    %v438 = vsel %vm433, %v431, %v436
    %v439 = vsel %vm434, %v432, %v437
    %440 = vmatprep.subr.mxu0 0.0
    %441 = vmatpush1.msra.mxu0 %v438
    %442 = vmatprep.subr.mxu0 0.0
    %443 = vmatpush1.msra.mxu0 %v439
    %444 = vmatprep.subr.mxu0 0.0
    %445 = vmatpush1.msra.mxu0 0.0
    %446 = vmatprep.subr.mxu0 0.0
    %447 = vmatpush1.msra.mxu0 0.0
    %448 = vmatprep.subr.mxu0 0.0
    %449 = vmatpush1.msra.mxu0 0.0
    %450 = vmatprep.subr.mxu0 0.0
    %451 = vmatpush1.msra.mxu0 0.0
    %452 = vmatprep.subr.mxu0 0.0
    %453 = vmatpush1.msra.mxu0 0.0
    %454 = vmatprep.subr.mxu0 0.0
    %455 = vmatpush1.msra.mxu0 0.0
    %456 = vmatprep.subr.mxu0 0.0
    %457 = vmatpush1.msra.mxu0 0.0
    %458 = vmatprep.subr.mxu0 0.0
    %459 = vmatpush1.msra.mxu0 0.0
    %460 = vmatprep.subr.mxu0 0.0
    %461 = vmatpush1.msra.mxu0 0.0
    %462 = vmatprep.subr.mxu0 0.0
    %463 = vmatpush1.msra.mxu0 0.0
    %464 = vmatprep.subr.mxu0 0.0
    %465 = vmatpush1.msra.mxu0 0.0
    %466 = vmatprep.subr.mxu0 0.0
    %467 = vmatpush1.msra.mxu0 0.0
    %468 = vmatprep.subr.mxu0 0.0
    %469 = vmatpush1.msra.mxu0 0.0
    %470 = vmatprep.subr.mxu0 0.0
    %471 = vmatpush1.msra.mxu0 0.0
    %472 = vmatprep.subr.mxu0 0.0
    %473 = vmatpush1.msra.mxu0 0.0
    %474 = vmatprep.subr.mxu0 0.0
    %475 = vmatpush1.msra.mxu0 0.0
    %476 = vmatprep.subr.mxu0 0.0
    %477 = vmatpush1.msra.mxu0 0.0
    %478 = vmatprep.subr.mxu0 0.0
    %479 = vmatpush1.msra.mxu0 0.0
    %480 = vmatprep.subr.mxu0 0.0
    %481 = vmatpush1.msra.mxu0 0.0
    %482 = vmatprep.subr.mxu0 0.0
    %483 = vmatpush1.msra.mxu0 0.0
    %484 = vmatprep.subr.mxu0 0.0
    %485 = vmatpush1.msra.mxu0 0.0
    %486 = vmatprep.subr.mxu0 0.0
    %487 = vmatpush1.msra.mxu0 0.0
    %488 = vmatprep.subr.mxu0 0.0
    %489 = vmatpush1.msra.mxu0 0.0
    %490 = vmatprep.subr.mxu0 0.0
    %491 = vmatpush1.msra.mxu0 0.0
    %492 = vmatprep.subr.mxu0 0.0
    %493 = vmatpush1.msra.mxu0 0.0
    %494 = vmatprep.subr.mxu0 0.0
    %495 = vmatpush1.msra.mxu0 0.0
    %496 = vmatprep.subr.mxu0 0.0
    %497 = vmatpush1.msra.mxu0 0.0
    %498 = vmatprep.subr.mxu0 0.0
    %499 = vmatpush1.msra.mxu0 0.0
    %500 = vmatprep.subr.mxu0 0.0
    %501 = vmatpush1.msra.mxu0 0.0
    %502 = vmatprep.subr.mxu0 0.0
    %503 = vmatpush1.msra.mxu0 0.0
    %504 = vmatprep.mubr.f32.mxu0 0.0
    %505 = vmatmul.mubr.f32.gmra.mrb[0].mxu0 %v153
    %v506 = vpop.f32.mrb[0].mxu0
    %v507 = vadd.f32 0.0, %v506
    %v508 = vpop.f32.mrb[0].mxu0
    %509 = vdwg.mxu0
    %v510 = vsel %vm225, %v507, 0.0
    %511 = vadd.xlane.f32.xlu0 %v510
    %v512 = vpop.xlane.xlu0 %511
    %v513 = vrot.slane %v512, 4
    %v514 = vadd.f32 %v512, %v513
    %v515 = vrot.slane %v514, 2
    %v516 = vadd.f32 %v514, %v515
    %v517 = vrot.slane %v516, 1
    %v518 = vadd.f32 %v516, %v517
    %s519 = vtos %v518
    %v520 = vmul.f32 %v438, %v438
    %v521 = vmul.f32 %v439, %v439
    %522 = vmatprep.subr.mxu0 0.0
    %523 = vmatpush1.msra.mxu0 %v520
    %524 = vmatprep.subr.mxu0 0.0
    %525 = vmatpush1.msra.mxu0 %v521
    %526 = vmatprep.subr.mxu0 0.0
    %527 = vmatpush1.msra.mxu0 0.0
    %528 = vmatprep.subr.mxu0 0.0
    %529 = vmatpush1.msra.mxu0 0.0
    %530 = vmatprep.subr.mxu0 0.0
    %531 = vmatpush1.msra.mxu0 0.0
    %532 = vmatprep.subr.mxu0 0.0
    %533 = vmatpush1.msra.mxu0 0.0
    %534 = vmatprep.subr.mxu0 0.0
    %535 = vmatpush1.msra.mxu0 0.0
    %536 = vmatprep.subr.mxu0 0.0
    %537 = vmatpush1.msra.mxu0 0.0
    %538 = vmatprep.subr.mxu0 0.0
    %539 = vmatpush1.msra.mxu0 0.0
    %540 = vmatprep.subr.mxu0 0.0
    %541 = vmatpush1.msra.mxu0 0.0
    %542 = vmatprep.subr.mxu0 0.0
    %543 = vmatpush1.msra.mxu0 0.0
    %544 = vmatprep.subr.mxu0 0.0
    %545 = vmatpush1.msra.mxu0 0.0
    %546 = vmatprep.subr.mxu0 0.0
    %547 = vmatpush1.msra.mxu0 0.0
    %548 = vmatprep.subr.mxu0 0.0
    %549 = vmatpush1.msra.mxu0 0.0
    %550 = vmatprep.subr.mxu0 0.0
    %551 = vmatpush1.msra.mxu0 0.0
    %552 = vmatprep.subr.mxu0 0.0
    %553 = vmatpush1.msra.mxu0 0.0
    %554 = vmatprep.subr.mxu0 0.0
    %555 = vmatpush1.msra.mxu0 0.0
    %556 = vmatprep.subr.mxu0 0.0
    %557 = vmatpush1.msra.mxu0 0.0
    %558 = vmatprep.subr.mxu0 0.0
    %559 = vmatpush1.msra.mxu0 0.0
    %560 = vmatprep.subr.mxu0 0.0
    %561 = vmatpush1.msra.mxu0 0.0
    %562 = vmatprep.subr.mxu0 0.0
    %563 = vmatpush1.msra.mxu0 0.0
    %564 = vmatprep.subr.mxu0 0.0
    %565 = vmatpush1.msra.mxu0 0.0
    %566 = vmatprep.subr.mxu0 0.0
    %567 = vmatpush1.msra.mxu0 0.0
    %568 = vmatprep.subr.mxu0 0.0
    %569 = vmatpush1.msra.mxu0 0.0
    %570 = vmatprep.subr.mxu0 0.0
    %571 = vmatpush1.msra.mxu0 0.0
    %572 = vmatprep.subr.mxu0 0.0
    %573 = vmatpush1.msra.mxu0 0.0
    %574 = vmatprep.subr.mxu0 0.0
    %575 = vmatpush1.msra.mxu0 0.0
    %576 = vmatprep.subr.mxu0 0.0
    %577 = vmatpush1.msra.mxu0 0.0
    %578 = vmatprep.subr.mxu0 0.0
    %579 = vmatpush1.msra.mxu0 0.0
    %580 = vmatprep.subr.mxu0 0.0
    %581 = vmatpush1.msra.mxu0 0.0
    %582 = vmatprep.subr.mxu0 0.0
    %583 = vmatpush1.msra.mxu0 0.0
    %584 = vmatprep.subr.mxu0 0.0
    %585 = vmatpush1.msra.mxu0 0.0
    %586 = vmatprep.mubr.f32.mxu0 0.0
    %587 = vmatmul.mubr.f32.gmra.mrb[0].mxu0 %v153
    %v588 = vpop.f32.mrb[0].mxu0
    %v589 = vadd.f32 0.0, %v588
    %v590 = vpop.f32.mrb[0].mxu0
    %591 = vdwg.mxu0
    %v592 = vsel %vm225, %v589, 0.0
    %593 = vadd.xlane.f32.xlu0 %v592
    %v594 = vpop.xlane.xlu0 %593
    %v595 = vrot.slane %v594, 4
    %v596 = vadd.f32 %v594, %v595
    %v597 = vrot.slane %v596, 2
    %v598 = vadd.f32 %v596, %v597
    %v599 = vrot.slane %v598, 1
    %v600 = vadd.f32 %v598, %v599
    %s601 = vtos %v600
    %s602 = smul.f32 %s519, 0.00048828125
    %s603 = smul.f32 %s601, 0.00048828125
    %s604 = smul.f32 %s602, %s602
    %s605 = ssub.f32 %s603, %s604
    %s606 = smax.f32 %s605, 0.0
    %s607 = sadd.f32 %s606, 1e-05
    %v608 = vstv %s607
    %v609 = vrsqrt.pop %v608
    %s610 = vtos %v609
    %v611 = vld [vmem:[%s5] sm:$0xff]
    %v613 = vsel %vm151, %v611, 0
    %615 = vmatprep.subr.mxu0 0.0
    %616 = vmatpush1.msra.mxu0 %v438
    %617 = vmatprep.subr.mxu0 0.0
    %618 = vmatpush1.msra.mxu0 %v439
    %619 = vmatprep.subr.mxu0 0.0
    %620 = vmatpush1.msra.mxu0 0.0
    %621 = vmatprep.subr.mxu0 0.0
    %622 = vmatpush1.msra.mxu0 0.0
    %623 = vmatprep.subr.mxu0 0.0
    %624 = vmatpush1.msra.mxu0 0.0
    %625 = vmatprep.subr.mxu0 0.0
    %626 = vmatpush1.msra.mxu0 0.0
    %627 = vmatprep.subr.mxu0 0.0
    %628 = vmatpush1.msra.mxu0 0.0
    %629 = vmatprep.subr.mxu0 0.0
    %630 = vmatpush1.msra.mxu0 0.0
    %631 = vmatprep.subr.mxu0 0.0
    %632 = vmatpush1.msra.mxu0 0.0
    %633 = vmatprep.subr.mxu0 0.0
    %634 = vmatpush1.msra.mxu0 0.0
    %635 = vmatprep.subr.mxu0 0.0
    %636 = vmatpush1.msra.mxu0 0.0
    %637 = vmatprep.subr.mxu0 0.0
    %638 = vmatpush1.msra.mxu0 0.0
    %639 = vmatprep.subr.mxu0 0.0
    %640 = vmatpush1.msra.mxu0 0.0
    %641 = vmatprep.subr.mxu0 0.0
    %642 = vmatpush1.msra.mxu0 0.0
    %643 = vmatprep.subr.mxu0 0.0
    %644 = vmatpush1.msra.mxu0 0.0
    %645 = vmatprep.subr.mxu0 0.0
    %646 = vmatpush1.msra.mxu0 0.0
    %647 = vmatprep.subr.mxu0 0.0
    %648 = vmatpush1.msra.mxu0 0.0
    %649 = vmatprep.subr.mxu0 0.0
    %650 = vmatpush1.msra.mxu0 0.0
    %651 = vmatprep.subr.mxu0 0.0
    %652 = vmatpush1.msra.mxu0 0.0
    %653 = vmatprep.subr.mxu0 0.0
    %654 = vmatpush1.msra.mxu0 0.0
    %655 = vmatprep.subr.mxu0 0.0
    %656 = vmatpush1.msra.mxu0 0.0
    %657 = vmatprep.subr.mxu0 0.0
    %658 = vmatpush1.msra.mxu0 0.0
    %659 = vmatprep.subr.mxu0 0.0
    %660 = vmatpush1.msra.mxu0 0.0
    %661 = vmatprep.subr.mxu0 0.0
    %662 = vmatpush1.msra.mxu0 0.0
    %663 = vmatprep.subr.mxu0 0.0
    %664 = vmatpush1.msra.mxu0 0.0
    %665 = vmatprep.subr.mxu0 0.0
    %666 = vmatpush1.msra.mxu0 0.0
    %667 = vmatprep.subr.mxu0 0.0
    %668 = vmatpush1.msra.mxu0 0.0
    %669 = vmatprep.subr.mxu0 0.0
    %670 = vmatpush1.msra.mxu0 0.0
    %671 = vmatprep.subr.mxu0 0.0
    %672 = vmatpush1.msra.mxu0 0.0
    %673 = vmatprep.subr.mxu0 0.0
    %674 = vmatpush1.msra.mxu0 0.0
    %675 = vmatprep.subr.mxu0 0.0
    %676 = vmatpush1.msra.mxu0 0.0
    %677 = vmatprep.subr.mxu0 0.0
    %678 = vmatpush1.msra.mxu0 0.0
    %679 = vmatprep.mubr.f32.mxu0 0.0
    %680 = vmatmul.mubr.f32.gmra.mrb[0].mxu0 %v613
    %v681 = vpop.f32.mrb[0].mxu0
    %v682 = vadd.f32 0.0, %v681
    %v683 = vpop.f32.mrb[0].mxu0
    %684 = vdwg.mxu0
    %v685 = vstv %s610
    %v686 = vmul.f32 %v685, %v682
    %s687 = smul.f32 %s610, %s602
    %v688 = vstv %s687
    %v689 = vmul.f32 %v688, %v42
    %691 = vrot.lane.b32.xlu0 %v689, 127
    %v692 = vpop.permute.xlu0 %691
    %v694 = vsub.f32 %v42, %v692
    %696 = vset.pattern.permute.xlu0 0
    %697 = vperm.xlu0 %696, %v694
    %v698 = vpop.permute.xlu0 %697
    %v700 = vadd.f32 %v686, %v698
    %v701 = vadd.f32 %v49, %v700
    %702 = vst [vmem:[#allocation5] sm:$0xff] %v701
    %v703 = vld [vmem:[%s3] sm:$0xff]
    %v704 = vld [vmem:[%s3 + $0x8] sm:$0xff]
    %s705 = scalar_lea.vmem %s1, 8
    %v706 = vld [vmem:[%s705] sm:$0xff]
    %s707 = scalar_lea.vmem %s2, 16
    %v708 = vld [vmem:[%s707] sm:$0xff]
    %v709 = vld [vmem:[%s707 + $0x8] sm:$0xff]
    %711 = vset.pattern.permute.xlu0 0
    %712 = vperm.xlu0 %711, %v708
    %v713 = vpop.permute.xlu0 %712
    %716 = vset.pattern.permute.xlu0 0
    %717 = vperm.xlu0 %716, %v709
    %v718 = vpop.permute.xlu0 %717
    %v721 = vsel %vm62, %v703, 0
    %v724 = vsel %vm62, %v704, 0
    %726 = vmatprep.subr.mxu0 0.0
    %727 = vmatpush1.msra.mxu0 %v706
    %728 = vmatprep.subr.mxu0 0.0
    %729 = vmatpush1.msra.mxu0 0.0
    %730 = vmatprep.subr.mxu0 0.0
    %731 = vmatpush1.msra.mxu0 0.0
    %732 = vmatprep.subr.mxu0 0.0
    %733 = vmatpush1.msra.mxu0 0.0
    %734 = vmatprep.subr.mxu0 0.0
    %735 = vmatpush1.msra.mxu0 0.0
    %736 = vmatprep.subr.mxu0 0.0
    %737 = vmatpush1.msra.mxu0 0.0
    %738 = vmatprep.subr.mxu0 0.0
    %739 = vmatpush1.msra.mxu0 0.0
    %740 = vmatprep.subr.mxu0 0.0
    %741 = vmatpush1.msra.mxu0 0.0
    %742 = vmatprep.subr.mxu0 0.0
    %743 = vmatpush1.msra.mxu0 0.0
    %744 = vmatprep.subr.mxu0 0.0
    %745 = vmatpush1.msra.mxu0 0.0
    %746 = vmatprep.subr.mxu0 0.0
    %747 = vmatpush1.msra.mxu0 0.0
    %748 = vmatprep.subr.mxu0 0.0
    %749 = vmatpush1.msra.mxu0 0.0
    %750 = vmatprep.subr.mxu0 0.0
    %751 = vmatpush1.msra.mxu0 0.0
    %752 = vmatprep.subr.mxu0 0.0
    %753 = vmatpush1.msra.mxu0 0.0
    %754 = vmatprep.subr.mxu0 0.0
    %755 = vmatpush1.msra.mxu0 0.0
    %756 = vmatprep.subr.mxu0 0.0
    %757 = vmatpush1.msra.mxu0 0.0
    %758 = vmatprep.subr.mxu0 0.0
    %759 = vmatpush1.msra.mxu0 0.0
    %760 = vmatprep.subr.mxu0 0.0
    %761 = vmatpush1.msra.mxu0 0.0
    %762 = vmatprep.subr.mxu0 0.0
    %763 = vmatpush1.msra.mxu0 0.0
    %764 = vmatprep.subr.mxu0 0.0
    %765 = vmatpush1.msra.mxu0 0.0
    %766 = vmatprep.subr.mxu0 0.0
    %767 = vmatpush1.msra.mxu0 0.0
    %768 = vmatprep.subr.mxu0 0.0
    %769 = vmatpush1.msra.mxu0 0.0
    %770 = vmatprep.subr.mxu0 0.0
    %771 = vmatpush1.msra.mxu0 0.0
    %772 = vmatprep.subr.mxu0 0.0
    %773 = vmatpush1.msra.mxu0 0.0
    %774 = vmatprep.subr.mxu0 0.0
    %775 = vmatpush1.msra.mxu0 0.0
    %776 = vmatprep.subr.mxu0 0.0
    %777 = vmatpush1.msra.mxu0 0.0
    %778 = vmatprep.subr.mxu0 0.0
    %779 = vmatpush1.msra.mxu0 0.0
    %780 = vmatprep.subr.mxu0 0.0
    %781 = vmatpush1.msra.mxu0 0.0
    %782 = vmatprep.subr.mxu0 0.0
    %783 = vmatpush1.msra.mxu0 0.0
    %784 = vmatprep.subr.mxu0 0.0
    %785 = vmatpush1.msra.mxu0 0.0
    %786 = vmatprep.subr.mxu0 0.0
    %787 = vmatpush1.msra.mxu0 0.0
    %788 = vmatprep.subr.mxu0 0.0
    %789 = vmatpush1.msra.mxu0 0.0
    %790 = vmatprep.mubr.f32.mxu0 0.0
    %791 = vmatmul.mubr.f32.gmra.mrb[0].mxu0 %v721
    %v792 = vpop.f32.mrb[0].mxu0
    %v793 = vadd.f32 %v713, %v792
    %v794 = vpop.f32.mrb[0].mxu0
    %795 = vmatprep.mubr.f32.mxu0 0.0
    %796 = vmatmul.mubr.f32.gmra.mrb[0].mxu0 %v724
    %v797 = vpop.f32.mrb[0].mxu0
    %v798 = vadd.f32 %v718, %v797
    %v799 = vpop.f32.mrb[0].mxu0
    %800 = vdwg.mxu0
    %vm801 = vcmp.gt.f32.partialorder %v793, 0.0
    %vm802 = vcmp.gt.f32.partialorder %v798, 0.0
    %v803 = vmul.f32 %v146, %v793
    %v804 = vmul.f32 %v146, %v798
    %v805 = vsel %vm801, %v793, %v803
    %v806 = vsel %vm802, %v798, %v804
    %807 = vmatprep.subr.mxu0 0.0
    %808 = vmatpush1.msra.mxu0 %v805
    %809 = vmatprep.subr.mxu0 0.0
    %810 = vmatpush1.msra.mxu0 %v806
    %811 = vmatprep.subr.mxu0 0.0
    %812 = vmatpush1.msra.mxu0 0.0
    %813 = vmatprep.subr.mxu0 0.0
    %814 = vmatpush1.msra.mxu0 0.0
    %815 = vmatprep.subr.mxu0 0.0
    %816 = vmatpush1.msra.mxu0 0.0
    %817 = vmatprep.subr.mxu0 0.0
    %818 = vmatpush1.msra.mxu0 0.0
    %819 = vmatprep.subr.mxu0 0.0
    %820 = vmatpush1.msra.mxu0 0.0
    %821 = vmatprep.subr.mxu0 0.0
    %822 = vmatpush1.msra.mxu0 0.0
    %823 = vmatprep.subr.mxu0 0.0
    %824 = vmatpush1.msra.mxu0 0.0
    %825 = vmatprep.subr.mxu0 0.0
    %826 = vmatpush1.msra.mxu0 0.0
    %827 = vmatprep.subr.mxu0 0.0
    %828 = vmatpush1.msra.mxu0 0.0
    %829 = vmatprep.subr.mxu0 0.0
    %830 = vmatpush1.msra.mxu0 0.0
    %831 = vmatprep.subr.mxu0 0.0
    %832 = vmatpush1.msra.mxu0 0.0
    %833 = vmatprep.subr.mxu0 0.0
    %834 = vmatpush1.msra.mxu0 0.0
    %835 = vmatprep.subr.mxu0 0.0
    %836 = vmatpush1.msra.mxu0 0.0
    %837 = vmatprep.subr.mxu0 0.0
    %838 = vmatpush1.msra.mxu0 0.0
    %839 = vmatprep.subr.mxu0 0.0
    %840 = vmatpush1.msra.mxu0 0.0
    %841 = vmatprep.subr.mxu0 0.0
    %842 = vmatpush1.msra.mxu0 0.0
    %843 = vmatprep.subr.mxu0 0.0
    %844 = vmatpush1.msra.mxu0 0.0
    %845 = vmatprep.subr.mxu0 0.0
    %846 = vmatpush1.msra.mxu0 0.0
    %847 = vmatprep.subr.mxu0 0.0
    %848 = vmatpush1.msra.mxu0 0.0
    %849 = vmatprep.subr.mxu0 0.0
    %850 = vmatpush1.msra.mxu0 0.0
    %851 = vmatprep.subr.mxu0 0.0
    %852 = vmatpush1.msra.mxu0 0.0
    %853 = vmatprep.subr.mxu0 0.0
    %854 = vmatpush1.msra.mxu0 0.0
    %855 = vmatprep.subr.mxu0 0.0
    %856 = vmatpush1.msra.mxu0 0.0
    %857 = vmatprep.subr.mxu0 0.0
    %858 = vmatpush1.msra.mxu0 0.0
    %859 = vmatprep.subr.mxu0 0.0
    %860 = vmatpush1.msra.mxu0 0.0
    %861 = vmatprep.subr.mxu0 0.0
    %862 = vmatpush1.msra.mxu0 0.0
    %863 = vmatprep.subr.mxu0 0.0
    %864 = vmatpush1.msra.mxu0 0.0
    %865 = vmatprep.subr.mxu0 0.0
    %866 = vmatpush1.msra.mxu0 0.0
    %867 = vmatprep.subr.mxu0 0.0
    %868 = vmatpush1.msra.mxu0 0.0
    %869 = vmatprep.subr.mxu0 0.0
    %870 = vmatpush1.msra.mxu0 0.0
    %871 = vmatprep.mubr.f32.mxu0 0.0
    %872 = vmatmul.mubr.f32.gmra.mrb[0].mxu0 %v153
    %v873 = vpop.f32.mrb[0].mxu0
    %v874 = vadd.f32 0.0, %v873
    %v875 = vpop.f32.mrb[0].mxu0
    %876 = vdwg.mxu0
    %v877 = vsel %vm225, %v874, 0.0
    %878 = vadd.xlane.f32.xlu0 %v877
    %v879 = vpop.xlane.xlu0 %878
    %v880 = vrot.slane %v879, 4
    %v881 = vadd.f32 %v879, %v880
    %v882 = vrot.slane %v881, 2
    %v883 = vadd.f32 %v881, %v882
    %v884 = vrot.slane %v883, 1
    %v885 = vadd.f32 %v883, %v884
    %s886 = vtos %v885
    %v887 = vmul.f32 %v805, %v805
    %v888 = vmul.f32 %v806, %v806
    %889 = vmatprep.subr.mxu0 0.0
    %890 = vmatpush1.msra.mxu0 %v887
    %891 = vmatprep.subr.mxu0 0.0
    %892 = vmatpush1.msra.mxu0 %v888
    %893 = vmatprep.subr.mxu0 0.0
    %894 = vmatpush1.msra.mxu0 0.0
    %895 = vmatprep.subr.mxu0 0.0
    %896 = vmatpush1.msra.mxu0 0.0
    %897 = vmatprep.subr.mxu0 0.0
    %898 = vmatpush1.msra.mxu0 0.0
    %899 = vmatprep.subr.mxu0 0.0
    %900 = vmatpush1.msra.mxu0 0.0
    %901 = vmatprep.subr.mxu0 0.0
    %902 = vmatpush1.msra.mxu0 0.0
    %903 = vmatprep.subr.mxu0 0.0
    %904 = vmatpush1.msra.mxu0 0.0
    %905 = vmatprep.subr.mxu0 0.0
    %906 = vmatpush1.msra.mxu0 0.0
    %907 = vmatprep.subr.mxu0 0.0
    %908 = vmatpush1.msra.mxu0 0.0
    %909 = vmatprep.subr.mxu0 0.0
    %910 = vmatpush1.msra.mxu0 0.0
    %911 = vmatprep.subr.mxu0 0.0
    %912 = vmatpush1.msra.mxu0 0.0
    %913 = vmatprep.subr.mxu0 0.0
    %914 = vmatpush1.msra.mxu0 0.0
    %915 = vmatprep.subr.mxu0 0.0
    %916 = vmatpush1.msra.mxu0 0.0
    %917 = vmatprep.subr.mxu0 0.0
    %918 = vmatpush1.msra.mxu0 0.0
    %919 = vmatprep.subr.mxu0 0.0
    %920 = vmatpush1.msra.mxu0 0.0
    %921 = vmatprep.subr.mxu0 0.0
    %922 = vmatpush1.msra.mxu0 0.0
    %923 = vmatprep.subr.mxu0 0.0
    %924 = vmatpush1.msra.mxu0 0.0
    %925 = vmatprep.subr.mxu0 0.0
    %926 = vmatpush1.msra.mxu0 0.0
    %927 = vmatprep.subr.mxu0 0.0
    %928 = vmatpush1.msra.mxu0 0.0
    %929 = vmatprep.subr.mxu0 0.0
    %930 = vmatpush1.msra.mxu0 0.0
    %931 = vmatprep.subr.mxu0 0.0
    %932 = vmatpush1.msra.mxu0 0.0
    %933 = vmatprep.subr.mxu0 0.0
    %934 = vmatpush1.msra.mxu0 0.0
    %935 = vmatprep.subr.mxu0 0.0
    %936 = vmatpush1.msra.mxu0 0.0
    %937 = vmatprep.subr.mxu0 0.0
    %938 = vmatpush1.msra.mxu0 0.0
    %939 = vmatprep.subr.mxu0 0.0
    %940 = vmatpush1.msra.mxu0 0.0
    %941 = vmatprep.subr.mxu0 0.0
    %942 = vmatpush1.msra.mxu0 0.0
    %943 = vmatprep.subr.mxu0 0.0
    %944 = vmatpush1.msra.mxu0 0.0
    %945 = vmatprep.subr.mxu0 0.0
    %946 = vmatpush1.msra.mxu0 0.0
    %947 = vmatprep.subr.mxu0 0.0
    %948 = vmatpush1.msra.mxu0 0.0
    %949 = vmatprep.subr.mxu0 0.0
    %950 = vmatpush1.msra.mxu0 0.0
    %951 = vmatprep.subr.mxu0 0.0
    %952 = vmatpush1.msra.mxu0 0.0
    %953 = vmatprep.mubr.f32.mxu0 0.0
    %954 = vmatmul.mubr.f32.gmra.mrb[0].mxu0 %v153
    %v955 = vpop.f32.mrb[0].mxu0
    %v956 = vadd.f32 0.0, %v955
    %v957 = vpop.f32.mrb[0].mxu0
    %958 = vdwg.mxu0
    %v959 = vsel %vm225, %v956, 0.0
    %960 = vadd.xlane.f32.xlu0 %v959
    %v961 = vpop.xlane.xlu0 %960
    %v962 = vrot.slane %v961, 4
    %v963 = vadd.f32 %v961, %v962
    %v964 = vrot.slane %v963, 2
    %v965 = vadd.f32 %v963, %v964
    %v966 = vrot.slane %v965, 1
    %v967 = vadd.f32 %v965, %v966
    %s968 = vtos %v967
    %s969 = smul.f32 %s886, 0.00048828125
    %s970 = smul.f32 %s968, 0.00048828125
    %s971 = smul.f32 %s969, %s969
    %s972 = ssub.f32 %s970, %s971
    %s973 = smax.f32 %s972, 0.0
    %s974 = sadd.f32 %s973, 1e-05
    %v975 = vstv %s974
    %v976 = vrsqrt.pop %v975
    %s977 = vtos %v976
    %v978 = vstv %s977
    %v979 = vmul.f32 %v40, %v978
    %v980 = vmul.f32 %v41, %v978
    %v981 = vstv %s969
    %v982 = vmul.f32 %v981, %v979
    %v983 = vmul.f32 %v981, %v980
    %986 = vrot.lane.b32.xlu0 %v982, 1
    %v987 = vpop.permute.xlu0 %986
    %988 = vrot.lane.b32.xlu0 %v983, 1
    %v989 = vpop.permute.xlu0 %988
    %v992 = vsub.f32 %v40, %v987
    %v993 = vsub.f32 %v41, %v989
    %995 = vset.pattern.permute.xlu0 4
    %996 = vperm.xlu0 %995, %v979
    %v997 = vpop.permute.xlu0 %996
    %1000 = vset.pattern.permute.xlu0 4
    %1001 = vperm.xlu0 %1000, %v980
    %v1002 = vpop.permute.xlu0 %1001
    %v1004 = vmul.f32 %v805, %v997
    %v1005 = vmul.f32 %v806, %v1002
    %1007 = vset.pattern.permute.xlu0 5
    %1008 = vperm.xlu0 %1007, %v992
    %v1009 = vpop.permute.xlu0 %1008
    %1012 = vset.pattern.permute.xlu0 5
    %1013 = vperm.xlu0 %1012, %v993
    %v1014 = vpop.permute.xlu0 %1013
    %v1016 = vadd.f32 %v1004, %v1009
    %v1017 = vadd.f32 %v1005, %v1014
    %1018 = vrot.lane.b32.xlu0 %v1016, 2
    %v1019 = vpop.permute.xlu0 %1018
    %1020 = vrot.lane.b32.xlu0 %v1017, 2
    %v1021 = vpop.permute.xlu0 %1020
    %v1022 = vsel %vm373, %v1019, 0.0
    %v1023 = vsel %vm373, %v1021, 0.0
    %v1024 = vmul.f32 %v379, %v1022
    %v1025 = vmul.f32 %v384, %v1023
    %v1026 = vadd.f32 %v1024, 0.0
    %v1027 = vadd.f32 %v1025, 0.0
    %v1028 = vmul.f32 %v392, %v1016
    %v1029 = vmul.f32 %v396, %v1017
    %v1030 = vadd.f32 %v1026, %v1028
    %v1031 = vadd.f32 %v1027, %v1029
    %1032 = vrot.lane.b32.xlu0 %v1016, 126
    %v1033 = vpop.permute.xlu0 %1032
    %1034 = vrot.lane.b32.xlu0 %v1017, 126
    %v1035 = vpop.permute.xlu0 %1034
    %v1036 = vsel %vm408, %v1033, 0.0
    %v1037 = vsel %vm408, %v1035, 0.0
    %v1038 = vmul.f32 %v413, %v1036
    %v1039 = vmul.f32 %v417, %v1037
    %v1040 = vadd.f32 %v1030, %v1038
    %v1041 = vadd.f32 %v1031, %v1039
    %v1042 = vadd.f32 %v1040, %v425
    %v1043 = vadd.f32 %v1041, %v429
    %vm1044 = vcmp.gt.f32.partialorder %v1042, 0.0
    %vm1045 = vcmp.gt.f32.partialorder %v1043, 0.0
    %v1046 = vmul.f32 %v435, %v1042
    %v1047 = vmul.f32 %v435, %v1043
    %v1048 = vsel %vm1044, %v1042, %v1046
    %v1049 = vsel %vm1045, %v1043, %v1047
    %1050 = vmatprep.subr.mxu0 0.0
    %1051 = vmatpush1.msra.mxu0 %v1048
    %1052 = vmatprep.subr.mxu0 0.0
    %1053 = vmatpush1.msra.mxu0 %v1049
    %1054 = vmatprep.subr.mxu0 0.0
    %1055 = vmatpush1.msra.mxu0 0.0
    %1056 = vmatprep.subr.mxu0 0.0
    %1057 = vmatpush1.msra.mxu0 0.0
    %1058 = vmatprep.subr.mxu0 0.0
    %1059 = vmatpush1.msra.mxu0 0.0
    %1060 = vmatprep.subr.mxu0 0.0
    %1061 = vmatpush1.msra.mxu0 0.0
    %1062 = vmatprep.subr.mxu0 0.0
    %1063 = vmatpush1.msra.mxu0 0.0
    %1064 = vmatprep.subr.mxu0 0.0
    %1065 = vmatpush1.msra.mxu0 0.0
    %1066 = vmatprep.subr.mxu0 0.0
    %1067 = vmatpush1.msra.mxu0 0.0
    %1068 = vmatprep.subr.mxu0 0.0
    %1069 = vmatpush1.msra.mxu0 0.0
    %1070 = vmatprep.subr.mxu0 0.0
    %1071 = vmatpush1.msra.mxu0 0.0
    %1072 = vmatprep.subr.mxu0 0.0
    %1073 = vmatpush1.msra.mxu0 0.0
    %1074 = vmatprep.subr.mxu0 0.0
    %1075 = vmatpush1.msra.mxu0 0.0
    %1076 = vmatprep.subr.mxu0 0.0
    %1077 = vmatpush1.msra.mxu0 0.0
    %1078 = vmatprep.subr.mxu0 0.0
    %1079 = vmatpush1.msra.mxu0 0.0
    %1080 = vmatprep.subr.mxu0 0.0
    %1081 = vmatpush1.msra.mxu0 0.0
    %1082 = vmatprep.subr.mxu0 0.0
    %1083 = vmatpush1.msra.mxu0 0.0
    %1084 = vmatprep.subr.mxu0 0.0
    %1085 = vmatpush1.msra.mxu0 0.0
    %1086 = vmatprep.subr.mxu0 0.0
    %1087 = vmatpush1.msra.mxu0 0.0
    %1088 = vmatprep.subr.mxu0 0.0
    %1089 = vmatpush1.msra.mxu0 0.0
    %1090 = vmatprep.subr.mxu0 0.0
    %1091 = vmatpush1.msra.mxu0 0.0
    %1092 = vmatprep.subr.mxu0 0.0
    %1093 = vmatpush1.msra.mxu0 0.0
    %1094 = vmatprep.subr.mxu0 0.0
    %1095 = vmatpush1.msra.mxu0 0.0
    %1096 = vmatprep.subr.mxu0 0.0
    %1097 = vmatpush1.msra.mxu0 0.0
    %1098 = vmatprep.subr.mxu0 0.0
    %1099 = vmatpush1.msra.mxu0 0.0
    %1100 = vmatprep.subr.mxu0 0.0
    %1101 = vmatpush1.msra.mxu0 0.0
    %1102 = vmatprep.subr.mxu0 0.0
    %1103 = vmatpush1.msra.mxu0 0.0
    %1104 = vmatprep.subr.mxu0 0.0
    %1105 = vmatpush1.msra.mxu0 0.0
    %1106 = vmatprep.subr.mxu0 0.0
    %1107 = vmatpush1.msra.mxu0 0.0
    %1108 = vmatprep.subr.mxu0 0.0
    %1109 = vmatpush1.msra.mxu0 0.0
    %1110 = vmatprep.subr.mxu0 0.0
    %1111 = vmatpush1.msra.mxu0 0.0
    %1112 = vmatprep.subr.mxu0 0.0
    %1113 = vmatpush1.msra.mxu0 0.0
    %1114 = vmatprep.mubr.f32.mxu0 0.0
    %1115 = vmatmul.mubr.f32.gmra.mrb[0].mxu0 %v153
    %v1116 = vpop.f32.mrb[0].mxu0
    %v1117 = vadd.f32 0.0, %v1116
    %v1118 = vpop.f32.mrb[0].mxu0
    %1119 = vdwg.mxu0
    %v1120 = vsel %vm225, %v1117, 0.0
    %1121 = vadd.xlane.f32.xlu0 %v1120
    %v1122 = vpop.xlane.xlu0 %1121
    %v1123 = vrot.slane %v1122, 4
    %v1124 = vadd.f32 %v1122, %v1123
    %v1125 = vrot.slane %v1124, 2
    %v1126 = vadd.f32 %v1124, %v1125
    %v1127 = vrot.slane %v1126, 1
    %v1128 = vadd.f32 %v1126, %v1127
    %s1129 = vtos %v1128
    %v1130 = vmul.f32 %v1048, %v1048
    %v1131 = vmul.f32 %v1049, %v1049
    %1132 = vmatprep.subr.mxu0 0.0
    %1133 = vmatpush1.msra.mxu0 %v1130
    %1134 = vmatprep.subr.mxu0 0.0
    %1135 = vmatpush1.msra.mxu0 %v1131
    %1136 = vmatprep.subr.mxu0 0.0
    %1137 = vmatpush1.msra.mxu0 0.0
    %1138 = vmatprep.subr.mxu0 0.0
    %1139 = vmatpush1.msra.mxu0 0.0
    %1140 = vmatprep.subr.mxu0 0.0
    %1141 = vmatpush1.msra.mxu0 0.0
    %1142 = vmatprep.subr.mxu0 0.0
    %1143 = vmatpush1.msra.mxu0 0.0
    %1144 = vmatprep.subr.mxu0 0.0
    %1145 = vmatpush1.msra.mxu0 0.0
    %1146 = vmatprep.subr.mxu0 0.0
    %1147 = vmatpush1.msra.mxu0 0.0
    %1148 = vmatprep.subr.mxu0 0.0
    %1149 = vmatpush1.msra.mxu0 0.0
    %1150 = vmatprep.subr.mxu0 0.0
    %1151 = vmatpush1.msra.mxu0 0.0
    %1152 = vmatprep.subr.mxu0 0.0
    %1153 = vmatpush1.msra.mxu0 0.0
    %1154 = vmatprep.subr.mxu0 0.0
    %1155 = vmatpush1.msra.mxu0 0.0
    %1156 = vmatprep.subr.mxu0 0.0
    %1157 = vmatpush1.msra.mxu0 0.0
    %1158 = vmatprep.subr.mxu0 0.0
    %1159 = vmatpush1.msra.mxu0 0.0
    %1160 = vmatprep.subr.mxu0 0.0
    %1161 = vmatpush1.msra.mxu0 0.0
    %1162 = vmatprep.subr.mxu0 0.0
    %1163 = vmatpush1.msra.mxu0 0.0
    %1164 = vmatprep.subr.mxu0 0.0
    %1165 = vmatpush1.msra.mxu0 0.0
    %1166 = vmatprep.subr.mxu0 0.0
    %1167 = vmatpush1.msra.mxu0 0.0
    %1168 = vmatprep.subr.mxu0 0.0
    %1169 = vmatpush1.msra.mxu0 0.0
    %1170 = vmatprep.subr.mxu0 0.0
    %1171 = vmatpush1.msra.mxu0 0.0
    %1172 = vmatprep.subr.mxu0 0.0
    %1173 = vmatpush1.msra.mxu0 0.0
    %1174 = vmatprep.subr.mxu0 0.0
    %1175 = vmatpush1.msra.mxu0 0.0
    %1176 = vmatprep.subr.mxu0 0.0
    %1177 = vmatpush1.msra.mxu0 0.0
    %1178 = vmatprep.subr.mxu0 0.0
    %1179 = vmatpush1.msra.mxu0 0.0
    %1180 = vmatprep.subr.mxu0 0.0
    %1181 = vmatpush1.msra.mxu0 0.0
    %1182 = vmatprep.subr.mxu0 0.0
    %1183 = vmatpush1.msra.mxu0 0.0
    %1184 = vmatprep.subr.mxu0 0.0
    %1185 = vmatpush1.msra.mxu0 0.0
    %1186 = vmatprep.subr.mxu0 0.0
    %1187 = vmatpush1.msra.mxu0 0.0
    %1188 = vmatprep.subr.mxu0 0.0
    %1189 = vmatpush1.msra.mxu0 0.0
    %1190 = vmatprep.subr.mxu0 0.0
    %1191 = vmatpush1.msra.mxu0 0.0
    %1192 = vmatprep.subr.mxu0 0.0
    %1193 = vmatpush1.msra.mxu0 0.0
    %1194 = vmatprep.subr.mxu0 0.0
    %1195 = vmatpush1.msra.mxu0 0.0
    %1196 = vmatprep.mubr.f32.mxu0 0.0
    %1197 = vmatmul.mubr.f32.gmra.mrb[0].mxu0 %v153
    %v1198 = vpop.f32.mrb[0].mxu0
    %v1199 = vadd.f32 0.0, %v1198
    %v1200 = vpop.f32.mrb[0].mxu0
    %1201 = vdwg.mxu0
    %v1202 = vsel %vm225, %v1199, 0.0
    %1203 = vadd.xlane.f32.xlu0 %v1202
    %v1204 = vpop.xlane.xlu0 %1203
    %v1205 = vrot.slane %v1204, 4
    %v1206 = vadd.f32 %v1204, %v1205
    %v1207 = vrot.slane %v1206, 2
    %v1208 = vadd.f32 %v1206, %v1207
    %v1209 = vrot.slane %v1208, 1
    %v1210 = vadd.f32 %v1208, %v1209
    %s1211 = vtos %v1210
    %s1212 = smul.f32 %s1129, 0.00048828125
    %s1213 = smul.f32 %s1211, 0.00048828125
    %s1214 = smul.f32 %s1212, %s1212
    %s1215 = ssub.f32 %s1213, %s1214
    %s1216 = smax.f32 %s1215, 0.0
    %s1217 = sadd.f32 %s1216, 1e-05
    %v1218 = vstv %s1217
    %v1219 = vrsqrt.pop %v1218
    %s1220 = vtos %v1219
    %v1221 = vld [vmem:[%s5] sm:$0xff]
    %v1223 = vsel %vm151, %v1221, 0
    %1225 = vmatprep.subr.mxu0 0.0
    %1226 = vmatpush1.msra.mxu0 %v1048
    %1227 = vmatprep.subr.mxu0 0.0
    %1228 = vmatpush1.msra.mxu0 %v1049
    %1229 = vmatprep.subr.mxu0 0.0
    %1230 = vmatpush1.msra.mxu0 0.0
    %1231 = vmatprep.subr.mxu0 0.0
    %1232 = vmatpush1.msra.mxu0 0.0
    %1233 = vmatprep.subr.mxu0 0.0
    %1234 = vmatpush1.msra.mxu0 0.0
    %1235 = vmatprep.subr.mxu0 0.0
    %1236 = vmatpush1.msra.mxu0 0.0
    %1237 = vmatprep.subr.mxu0 0.0
    %1238 = vmatpush1.msra.mxu0 0.0
    %1239 = vmatprep.subr.mxu0 0.0
    %1240 = vmatpush1.msra.mxu0 0.0
    %1241 = vmatprep.subr.mxu0 0.0
    %1242 = vmatpush1.msra.mxu0 0.0
    %1243 = vmatprep.subr.mxu0 0.0
    %1244 = vmatpush1.msra.mxu0 0.0
    %1245 = vmatprep.subr.mxu0 0.0
    %1246 = vmatpush1.msra.mxu0 0.0
    %1247 = vmatprep.subr.mxu0 0.0
    %1248 = vmatpush1.msra.mxu0 0.0
    %1249 = vmatprep.subr.mxu0 0.0
    %1250 = vmatpush1.msra.mxu0 0.0
    %1251 = vmatprep.subr.mxu0 0.0
    %1252 = vmatpush1.msra.mxu0 0.0
    %1253 = vmatprep.subr.mxu0 0.0
    %1254 = vmatpush1.msra.mxu0 0.0
    %1255 = vmatprep.subr.mxu0 0.0
    %1256 = vmatpush1.msra.mxu0 0.0
    %1257 = vmatprep.subr.mxu0 0.0
    %1258 = vmatpush1.msra.mxu0 0.0
    %1259 = vmatprep.subr.mxu0 0.0
    %1260 = vmatpush1.msra.mxu0 0.0
    %1261 = vmatprep.subr.mxu0 0.0
    %1262 = vmatpush1.msra.mxu0 0.0
    %1263 = vmatprep.subr.mxu0 0.0
    %1264 = vmatpush1.msra.mxu0 0.0
    %1265 = vmatprep.subr.mxu0 0.0
    %1266 = vmatpush1.msra.mxu0 0.0
    %1267 = vmatprep.subr.mxu0 0.0
    %1268 = vmatpush1.msra.mxu0 0.0
    %1269 = vmatprep.subr.mxu0 0.0
    %1270 = vmatpush1.msra.mxu0 0.0
    %1271 = vmatprep.subr.mxu0 0.0
    %1272 = vmatpush1.msra.mxu0 0.0
    %1273 = vmatprep.subr.mxu0 0.0
    %1274 = vmatpush1.msra.mxu0 0.0
    %1275 = vmatprep.subr.mxu0 0.0
    %1276 = vmatpush1.msra.mxu0 0.0
    %1277 = vmatprep.subr.mxu0 0.0
    %1278 = vmatpush1.msra.mxu0 0.0
    %1279 = vmatprep.subr.mxu0 0.0
    %1280 = vmatpush1.msra.mxu0 0.0
    %1281 = vmatprep.subr.mxu0 0.0
    %1282 = vmatpush1.msra.mxu0 0.0
    %1283 = vmatprep.subr.mxu0 0.0
    %1284 = vmatpush1.msra.mxu0 0.0
    %1285 = vmatprep.subr.mxu0 0.0
    %1286 = vmatpush1.msra.mxu0 0.0
    %1287 = vmatprep.subr.mxu0 0.0
    %1288 = vmatpush1.msra.mxu0 0.0
    %1289 = vmatprep.mubr.f32.mxu0 0.0
    %1290 = vmatmul.mubr.f32.gmra.mrb[0].mxu0 %v1223
    %v1291 = vpop.f32.mrb[0].mxu0
    %v1292 = vadd.f32 0.0, %v1291
    %v1293 = vpop.f32.mrb[0].mxu0
    %1294 = vdwg.mxu0
    %v1295 = vstv %s1220
    %v1296 = vmul.f32 %v1295, %v1292
    %s1297 = smul.f32 %s1220, %s1212
    %v1298 = vstv %s1297
    %v1299 = vmul.f32 %v1298, %v42
    %1301 = vrot.lane.b32.xlu0 %v1299, 127
    %v1302 = vpop.permute.xlu0 %1301
    %v1304 = vsub.f32 %v42, %v1302
    %1306 = vset.pattern.permute.xlu0 0
    %1307 = vperm.xlu0 %1306, %v1304
    %v1308 = vpop.permute.xlu0 %1307
    %v1310 = vadd.f32 %v1296, %v1308
    %v1311 = vadd.f32 %v706, %v1310
    %s1312 = scalar_lea.vmem [#allocation5], 8
    %1313 = vst [vmem:[%s1312] sm:$0xff] %v1311
    // Predicated region
    $region34: #{tpu_custom_call.1} parent=1 // pred_check
      _
    $region35: #{tpu_custom_call.1} parent=1 // pred_check_branch
      %1315 = sbr.rel (0) target = $region37
    $region36: #{tpu_custom_call.1} parent=1 // pred_region
      %s1317 = ssub.s32 256, 256
      %1318 = vsyncadd [#allocation3], %s1317
      %s1319 = sshll.u32 [#allocation5], 4
      %s1320 = int_to_ptr.vmem [resolvable:$true] %s1319
      %1325 = dma.vmem_to_hbm [thread:$0]  %s1320, 256, %s7, [#allocation3], 128, 128, 8
    $region37: #{tpu_custom_call.1} parent=1 // pred_fallthru
      _
    // Predicated region
    $region38: #{tpu_custom_call.1} parent=1 // pred_check
      _
    $region39: #{tpu_custom_call.1} parent=1 // pred_check_branch
      %1327 = sbr.rel (0) target = $region41
    $region40: #{tpu_custom_call.1} parent=1 // pred_region
      %1328 = dma.done [#allocation3], 256
    $region41: #{tpu_custom_call.1} parent=1 // pred_fallthru
      _
    %1329 = vsyncpa [#allocation3], 1
    %1330 = vsyncpa [#allocation4], 1

</llo_original>
